<compile_context>
chip_gen: v7x
topology: tpu7x:2x2x1
jax: 0.10.0
libtpu: 0.0.40
codegen_flags: <defaults>
</compile_context>

<pallas_src>
import functools

import jax
import jax.numpy as jnp
from jax.experimental import pallas as pl
from jax.experimental.pallas import tpu as pltpu


# ----------------------------------------------------------------------------
# In-kernel math helpers (elementwise; lower to VPU/EUP ops)
# ----------------------------------------------------------------------------
_LANCZOS_G = 7.0
_LANCZOS_COEF = (
    0.99999999999980993, 676.5203681218851, -1259.1392167224028,
    771.32342877765313, -176.61502916214059, 12.507343278686905,
    -0.13857109526572012, 9.9843695780195716e-6, 1.5056327351493116e-7,
)


def _lgamma(z):
    """Lanczos log-gamma for z >= ~0.5 (all in-kernel call sites obey this).

    Divides are replaced with approx EUP reciprocals per the perf review —
    the resulting ~1e-3 absolute error is negligible for a training loss.
    """
    zm1 = z - 1.0
    x = jnp.full_like(zm1, _LANCZOS_COEF[0])
    for i in range(1, len(_LANCZOS_COEF)):
        x = x + _LANCZOS_COEF[i] * pl.reciprocal(zm1 + float(i), approx=True)
    t = zm1 + _LANCZOS_G + 0.5
    return (0.5 * jnp.log(2.0 * jnp.pi)
            + (zm1 + 0.5) * jnp.log(t) - t + jnp.log(x))


def _softplus(t):
    # numerically stable softplus using only exp/log (EUP-friendly)
    return jnp.maximum(t, 0.0) + jnp.log(1.0 + jnp.exp(-jnp.abs(t)))


def _bn_relu(h, eps=1e-3):
    # BatchNorm1d training-mode stats (gamma=1, beta=0, eps=1e-3) + ReLU.
    mean = jnp.mean(h, axis=0, keepdims=True)
    var = jnp.mean((h - mean) ** 2, axis=0, keepdims=True)
    return jnp.maximum((h - mean) * jax.lax.rsqrt(var + eps), 0.0)


# ----------------------------------------------------------------------------
# Single fused kernel: encoders -> reparam -> decoder -> ZINB + KL losses
# ----------------------------------------------------------------------------
def _gaatac_fused_kernel(
    x_ref,                   # (B, G)  f32  raw counts
    lgx_ref,                 # (B, G)  f32  lgamma(x + 1), precomputed
    aux_ref,                 # (B, 128) f32 [l_mean | l_var | eps_l | eps_z(0:L) | 0]
    wenc_ref, benc_ref,      # (G, 2H) bf16, (1, 2H) f32   fused [z | l] first layer
    whead_ref, bhead_ref,    # (2H, 128) bf16, (1, 128) f32  fused encoder heads
    wdec_ref, bdec_ref,      # (L, H) bf16, (1, H) f32     decoder FC
    wdh_ref, bdh_ref,        # (H, 2G) bf16, (1, 2G) f32   fused [scale | dropout]
    pxr_ref,                 # (1, G)  f32  gene dispersion param
    out_ref,                 # (B, 128) f32  col0=reconst, col1=kl
    *, n_latent):
    f32 = jnp.float32
    bf16 = jnp.bfloat16
    L = n_latent
    x = x_ref[...]
    G = pxr_ref.shape[1]

    # ---- unpack the packed aux slab ----------------------------------------
    aux = aux_ref[...]
    lm = aux[:, 0:1]
    lv = aux[:, 1:2]
    eps_l = aux[:, 2:3]
    eps_z = aux[:, 3:3 + L]

    # ---- z & l encoder first layer (fused): Linear -> BN(train) -> ReLU ----
    h = jnp.dot(x.astype(bf16), wenc_ref[...],
                preferred_element_type=f32) + benc_ref[...]
    h = _bn_relu(h)                                            # (B, 2H) f32

    # ---- fused encoder heads: ONE (2H, 128) matmul --------------------------
    head = jnp.dot(h.astype(bf16), whead_ref[...],
                   preferred_element_type=f32) + bhead_ref[...]
    qz_m = head[:, 0:L]
    qz_v = jnp.exp(head[:, L:2 * L]) + 1e-4
    ql_m = head[:, 2 * L:2 * L + 1]
    ql_v = jnp.exp(head[:, 2 * L + 1:2 * L + 2]) + 1e-4
    z = qz_m + jnp.sqrt(qz_v) * eps_z                          # (B, L)
    library = ql_m + jnp.sqrt(ql_v) * eps_l                    # (B, 1)

    # ---- decoder FC layer ----------------------------------------------------
    hd = jnp.dot(z.astype(bf16), wdec_ref[...],
                 preferred_element_type=f32) + bdec_ref[...]
    hd = _bn_relu(hd)                                          # (B, H)

    # ---- decoder heads: one matmul for [px_scale_logits | px_dropout] -------
    dh = jnp.dot(hd.astype(bf16), wdh_ref[...],
                 preferred_element_type=f32) + bdh_ref[...]
    s_logits = dh[:, :G]
    pi = dh[:, G:]                                             # px_dropout logits

    m = jnp.max(s_logits, axis=-1, keepdims=True)
    e = jnp.exp(s_logits - m)
    px_scale = e * pl.reciprocal(jnp.sum(e, axis=-1, keepdims=True),
                                 approx=True)                  # softmax over genes
    mu = jnp.exp(library) * px_scale                           # px_rate

    # ---- ZINB negative log-likelihood (scvi log_zinb_positive) --------------
    eps = 1e-8
    pxr = pxr_ref[...]
    theta = jnp.exp(pxr)                                       # (1, G)
    # lgamma(theta) via recurrence: argument >= 1 keeps Lanczos accurate
    lg_theta = _lgamma(theta + 1.0) - pxr                      # hoisted: (1, G)
    softplus_pi = _softplus(-pi)
    log_theta_eps = jnp.log(theta + eps)
    log_theta_mu_eps = jnp.log(theta + mu + eps)
    pi_theta_log = -pi + theta * (log_theta_eps - log_theta_mu_eps)

    case_zero = _softplus(pi_theta_log) - softplus_pi
    case_non_zero = (-softplus_pi + pi_theta_log
                     + x * (jnp.log(mu + eps) - log_theta_mu_eps)
                     + _lgamma(x + theta) - lg_theta - lgx_ref[...])
    log_zinb = jnp.sum(jnp.where(x < eps, case_zero, 0.0)
                       + jnp.where(x > eps, case_non_zero, 0.0),
                       axis=-1, keepdims=True)
    rec = -log_zinb                                            # (B, 1)

    # ---- KL( N(qz_m, sqrt(qz_v)) || N(0, 1) ) --------------------------------
    kl_z = jnp.sum(0.5 * (qz_v + qz_m * qz_m - 1.0 - jnp.log(qz_v)),
                   axis=-1, keepdims=True)

    # ---- KL( N(ql_m, sqrt(ql_v)) || N(l_mean, sqrt(l_var)) ) -----------------
    vr = ql_v / lv
    kl_l = jnp.sum(0.5 * (vr + (ql_m - lm) ** 2 / lv - 1.0 - jnp.log(vr)),
                   axis=-1, keepdims=True)
    kl_tot = kl_l + kl_z                                       # (B, 1)

    # ---- single lane-dense store: col 0 = reconst, col 1 = kl ----------------
    col = jax.lax.broadcasted_iota(jnp.int32, out_ref.shape, 1)
    out_ref[...] = (jnp.where(col == 0, rec, 0.0)
                    + jnp.where(col == 1, kl_tot, 0.0))


# ----------------------------------------------------------------------------
# One-time parameter fusion (hoisted OUT of the per-step forward)
# ----------------------------------------------------------------------------
def prepare_params(params):
    """Build the fused / zero-padded / bf16 weight layout once."""
    f32, bf16 = jnp.float32, jnp.bfloat16
    G, H = params["ze_w"].shape
    L = params["ze_wm"].shape[1]
    assert 2 * L + 2 <= 128, "fused encoder head assumes 2L+2 <= 128 lanes"
    assert G % 128 == 0, "decoder-head concat assumes lane-aligned gene count"

    # Fused z/l encoder first layer (BN is per-feature, so concat is exact).
    w_enc = jnp.concatenate([params["ze_w"], params["le_w"]], axis=1)     # (G, 2H)
    b_enc = jnp.concatenate([params["ze_b"], params["le_b"]])[None, :]    # (1, 2H)

    # Fused encoder heads -> one (2H, 128) weight; columns:
    #   [qz_m (0:L) | qz_v (L:2L) | ql_m (2L) | ql_v (2L+1) | zero pad]
    w_head = jnp.zeros((2 * H, 128), f32)
    w_head = w_head.at[:H, 0:L].set(params["ze_wm"])
    w_head = w_head.at[:H, L:2 * L].set(params["ze_wv"])
    w_head = w_head.at[H:, 2 * L:2 * L + 1].set(params["le_wm"])
    w_head = w_head.at[H:, 2 * L + 1:2 * L + 2].set(params["le_wv"])
    b_head = jnp.zeros((1, 128), f32)
    b_head = b_head.at[0, 0:L].set(params["ze_bm"])
    b_head = b_head.at[0, L:2 * L].set(params["ze_bv"])
    b_head = b_head.at[0, 2 * L].set(params["le_bm"][0])
    b_head = b_head.at[0, 2 * L + 1].set(params["le_bv"][0])

    # Decoder heads fused; the px_alpha head is dropped (dead work for zinb).
    w_dh = jnp.concatenate([params["de_ws"], params["de_wd"]], axis=1)    # (H, 2G)
    b_dh = jnp.concatenate([params["de_bs"], params["de_bd"]])[None, :]   # (1, 2G)

    return dict(
        w_enc=w_enc.astype(bf16), b_enc=b_enc.astype(f32),
        w_head=w_head.astype(bf16), b_head=b_head.astype(f32),
        w_dec=params["de_w"].astype(bf16), b_dec=params["de_b"][None, :].astype(f32),
        w_dh=w_dh.astype(bf16), b_dh=b_dh.astype(f32),
        px_r=params["px_r"][None, :].astype(f32),
    ), L


# ----------------------------------------------------------------------------
# GAATAC forward: one pallas_call; weights are already in the fused layout
# ----------------------------------------------------------------------------
@functools.partial(jax.jit, static_argnames=("n_latent",))
def gaatac_forward(fused, x, lgamma_xp1, local_l_mean, local_l_var,
                   eps_z, eps_l, *, n_latent):
    f32 = jnp.float32
    B = x.shape[0]
    L = n_latent

    # Pack 1-lane-wide aux inputs into a single (B, 128) slab (one DMA).
    pad = jnp.zeros((B, 128 - 3 - L), f32)
    aux = jnp.concatenate(
        [local_l_mean.astype(f32), local_l_var.astype(f32),
         eps_l.astype(f32), eps_z.astype(f32), pad], axis=1)

    vmem = lambda: pl.BlockSpec(memory_space=pltpu.MemorySpace.VMEM)
    kernel = functools.partial(_gaatac_fused_kernel, n_latent=L)

    out = pl.pallas_call(
        kernel,
        out_shape=jax.ShapeDtypeStruct((B, 128), f32),
        in_specs=[vmem() for _ in range(12)],
        out_specs=vmem(),
        compiler_params=pltpu.CompilerParams(vmem_limit_bytes=32 * 1024 * 1024),
    )(x.astype(f32), lgamma_xp1.astype(f32), aux,
      fused["w_enc"], fused["b_enc"],
      fused["w_head"], fused["b_head"],
      fused["w_dec"], fused["b_dec"],
      fused["w_dh"], fused["b_dh"],
      fused["px_r"])
    return out[:, 0], out[:, 1]


# ----------------------------------------------------------------------------
# Main
# ----------------------------------------------------------------------------
if __name__ == "__main__":
    # Small demo shapes; the kernel is agnostic to B and benefits from B>=128
    # in a real training loop (MXU row utilization).
    B, G, H, L = 8, 256, 64, 18   # batch, n_input, n_hidden, n_latent

    key = jax.random.PRNGKey(0)
    ks = jax.random.split(key, 16)

    def nrm(k, shape, scale=0.05):
        return (jax.random.normal(k, shape) * scale).astype(jnp.float32)

    params = dict(
        # z encoder
        ze_w=nrm(ks[0], (G, H)), ze_b=jnp.zeros((H,), jnp.float32),
        ze_wm=nrm(ks[1], (H, L)), ze_bm=jnp.zeros((L,), jnp.float32),
        ze_wv=nrm(ks[2], (H, L)), ze_bv=jnp.zeros((L,), jnp.float32),
        # l encoder
        le_w=nrm(ks[3], (G, H)), le_b=jnp.zeros((H,), jnp.float32),
        le_wm=nrm(ks[4], (H, 1)), le_bm=jnp.zeros((1,), jnp.float32),
        le_wv=nrm(ks[5], (H, 1)), le_bv=jnp.zeros((1,), jnp.float32),
        # decoder (scale + dropout heads only; alpha head unused by zinb loss)
        de_w=nrm(ks[6], (L, H)), de_b=jnp.zeros((H,), jnp.float32),
        de_ws=nrm(ks[7], (H, G)), de_bs=jnp.zeros((G,), jnp.float32),
        de_wd=nrm(ks[8], (H, G)), de_bd=jnp.zeros((G,), jnp.float32),
        # gene-wise dispersion parameter (torch.randn(n_input))
        px_r=jax.random.normal(ks[10], (G,)).astype(jnp.float32),
    )

    # One-time fusion into the kernel's weight layout (NOT in the hot path).
    fused, n_latent = prepare_params(params)
    fused = jax.tree_util.tree_map(jax.block_until_ready, fused)

    x = jax.random.poisson(ks[11], 2.0, (B, G)).astype(jnp.float32)
    # Data-only precompute (once per minibatch, reused across epochs/steps).
    lgamma_xp1 = jax.lax.lgamma(x + 1.0)

    local_l_mean = jnp.full((B, 1), float(jnp.log(2.0 * G)), jnp.float32)
    local_l_var = jnp.full((B, 1), 1.0, jnp.float32)

    # deterministic reparameterization noise (stands in for torch RNG)
    eps_z = jax.random.normal(ks[12], (B, L), jnp.float32)
    eps_l = jax.random.normal(ks[13], (B, 1), jnp.float32)

    reconst_loss, kl_total = gaatac_forward(
        fused, x, lgamma_xp1, local_l_mean, local_l_var, eps_z, eps_l,
        n_latent=n_latent)
    jax.block_until_ready((reconst_loss, kl_total))

    assert reconst_loss.shape == (B,) and kl_total.shape == (B,)
    assert bool(jnp.all(jnp.isfinite(reconst_loss)))
    assert bool(jnp.all(jnp.isfinite(kl_total)))
    print("KERNEL_OK")
</pallas_src>

<mosaic_0001>
module attributes {stable_mosaic.version = 11 : i64} {
  func.func @_gaatac_fused_kernel(%arg0: memref<8x256xf32, #tpu.memory_space<vmem>>, %arg1: memref<8x256xf32, #tpu.memory_space<vmem>>, %arg2: memref<8x128xf32, #tpu.memory_space<vmem>>, %arg3: memref<256x128xbf16, #tpu.memory_space<vmem>>, %arg4: memref<1x128xf32, #tpu.memory_space<vmem>>, %arg5: memref<128x128xbf16, #tpu.memory_space<vmem>>, %arg6: memref<1x128xf32, #tpu.memory_space<vmem>>, %arg7: memref<18x64xbf16, #tpu.memory_space<vmem>>, %arg8: memref<1x64xf32, #tpu.memory_space<vmem>>, %arg9: memref<64x512xbf16, #tpu.memory_space<vmem>>, %arg10: memref<1x512xf32, #tpu.memory_space<vmem>>, %arg11: memref<1x256xf32, #tpu.memory_space<vmem>>, %arg12: memref<8x128xf32, #tpu.memory_space<vmem>>) attributes {dimension_semantics = [], scalar_prefetch = 0 : i64, scratch_operands = 0 : i64, tpu.core_type = #tpu.core_type<tc>} {
    %c0 = arith.constant 0 : index
    %c0_0 = arith.constant 0 : index
    %0 = vector.load %arg0[%c0, %c0_0] : memref<8x256xf32, #tpu.memory_space<vmem>>, vector<8x256xf32>
    %c0_1 = arith.constant 0 : index
    %c0_2 = arith.constant 0 : index
    %1 = vector.load %arg2[%c0_1, %c0_2] : memref<8x128xf32, #tpu.memory_space<vmem>>, vector<8x128xf32>
    %2 = vector.extract_strided_slice %1 {offsets = [0, 0], sizes = [8, 1], strides = [1, 1]} : vector<8x128xf32> to vector<8x1xf32>
    %3 = vector.extract_strided_slice %1 {offsets = [0, 1], sizes = [8, 1], strides = [1, 1]} : vector<8x128xf32> to vector<8x1xf32>
    %4 = vector.extract_strided_slice %1 {offsets = [0, 2], sizes = [8, 1], strides = [1, 1]} : vector<8x128xf32> to vector<8x1xf32>
    %5 = vector.extract_strided_slice %1 {offsets = [0, 3], sizes = [8, 18], strides = [1, 1]} : vector<8x128xf32> to vector<8x18xf32>
    %6 = arith.truncf %0 : vector<8x256xf32> to vector<8x256xbf16>
    %c0_3 = arith.constant 0 : index
    %c0_4 = arith.constant 0 : index
    %7 = vector.load %arg3[%c0_3, %c0_4] : memref<256x128xbf16, #tpu.memory_space<vmem>>, vector<256x128xbf16>
    %cst = arith.constant dense<0.000000e+00> : vector<8x128xf32>
    %8 = tpu.matmul %6, %7, %cst {dimension_numbers = #tpu.dot_dimension_numbers<[1], [0], [0], [1], [0, 0, 1, 1], [], []>} : vector<8x256xbf16>, vector<256x128xbf16>, vector<8x128xf32> -> vector<8x128xf32>
    %c0_5 = arith.constant 0 : index
    %c0_6 = arith.constant 0 : index
    %9 = vector.load %arg4[%c0_5, %c0_6] : memref<1x128xf32, #tpu.memory_space<vmem>>, vector<1x128xf32>
    %10 = vector.broadcast %9 : vector<1x128xf32> to vector<8x128xf32>
    %11 = arith.addf %8, %10 : vector<8x128xf32>
    %cst_7 = arith.constant dense<0.000000e+00> : vector<128xf32>
    %12 = vector.multi_reduction <add>, %11, %cst_7 [0] : vector<8x128xf32> to vector<128xf32>
    %13 = vector.shape_cast %12 : vector<128xf32> to vector<1x128xf32>
    %cst_8 = arith.constant 8.000000e+00 : f32
    %14 = vector.broadcast %cst_8 : f32 to vector<1x128xf32>
    %15 = arith.divf %13, %14 : vector<1x128xf32>
    %16 = vector.broadcast %15 : vector<1x128xf32> to vector<8x128xf32>
    %17 = arith.subf %11, %16 : vector<8x128xf32>
    %18 = arith.mulf %17, %17 : vector<8x128xf32>
    %cst_9 = arith.constant dense<0.000000e+00> : vector<128xf32>
    %19 = vector.multi_reduction <add>, %18, %cst_9 [0] : vector<8x128xf32> to vector<128xf32>
    %20 = vector.shape_cast %19 : vector<128xf32> to vector<1x128xf32>
    %cst_10 = arith.constant 8.000000e+00 : f32
    %21 = vector.broadcast %cst_10 : f32 to vector<1x128xf32>
    %22 = arith.divf %20, %21 : vector<1x128xf32>
    %23 = vector.broadcast %15 : vector<1x128xf32> to vector<8x128xf32>
    %24 = arith.subf %11, %23 : vector<8x128xf32>
    %cst_11 = arith.constant 1.000000e-03 : f32
    %25 = vector.broadcast %cst_11 : f32 to vector<1x128xf32>
    %26 = arith.addf %22, %25 : vector<1x128xf32>
    %27 = math.rsqrt %26 : vector<1x128xf32>
    %28 = vector.broadcast %27 : vector<1x128xf32> to vector<8x128xf32>
    %29 = arith.mulf %24, %28 : vector<8x128xf32>
    %cst_12 = arith.constant 0.000000e+00 : f32
    %30 = vector.broadcast %cst_12 : f32 to vector<8x128xf32>
    %31 = arith.maximumf %29, %30 : vector<8x128xf32>
    %32 = arith.truncf %31 : vector<8x128xf32> to vector<8x128xbf16>
    %c0_13 = arith.constant 0 : index
    %c0_14 = arith.constant 0 : index
    %33 = vector.load %arg5[%c0_13, %c0_14] : memref<128x128xbf16, #tpu.memory_space<vmem>>, vector<128x128xbf16>
    %cst_15 = arith.constant dense<0.000000e+00> : vector<8x128xf32>
    %34 = tpu.matmul %32, %33, %cst_15 {dimension_numbers = #tpu.dot_dimension_numbers<[1], [0], [0], [1], [0, 0, 1, 1], [], []>} : vector<8x128xbf16>, vector<128x128xbf16>, vector<8x128xf32> -> vector<8x128xf32>
    %c0_16 = arith.constant 0 : index
    %c0_17 = arith.constant 0 : index
    %35 = vector.load %arg6[%c0_16, %c0_17] : memref<1x128xf32, #tpu.memory_space<vmem>>, vector<1x128xf32>
    %36 = vector.broadcast %35 : vector<1x128xf32> to vector<8x128xf32>
    %37 = arith.addf %34, %36 : vector<8x128xf32>
    %38 = vector.extract_strided_slice %37 {offsets = [0, 0], sizes = [8, 18], strides = [1, 1]} : vector<8x128xf32> to vector<8x18xf32>
    %39 = vector.extract_strided_slice %37 {offsets = [0, 18], sizes = [8, 18], strides = [1, 1]} : vector<8x128xf32> to vector<8x18xf32>
    %40 = math.exp %39 : vector<8x18xf32>
    %cst_18 = arith.constant 9.99999974E-5 : f32
    %41 = vector.broadcast %cst_18 : f32 to vector<8x18xf32>
    %42 = arith.addf %40, %41 : vector<8x18xf32>
    %43 = vector.extract_strided_slice %37 {offsets = [0, 36], sizes = [8, 1], strides = [1, 1]} : vector<8x128xf32> to vector<8x1xf32>
    %44 = vector.extract_strided_slice %37 {offsets = [0, 37], sizes = [8, 1], strides = [1, 1]} : vector<8x128xf32> to vector<8x1xf32>
    %45 = math.exp %44 : vector<8x1xf32>
    %cst_19 = arith.constant 9.99999974E-5 : f32
    %46 = vector.broadcast %cst_19 : f32 to vector<8x1xf32>
    %47 = arith.addf %45, %46 : vector<8x1xf32>
    %48 = math.sqrt %42 : vector<8x18xf32>
    %49 = arith.mulf %48, %5 : vector<8x18xf32>
    %50 = arith.addf %38, %49 : vector<8x18xf32>
    %51 = math.sqrt %47 : vector<8x1xf32>
    %52 = arith.mulf %51, %4 : vector<8x1xf32>
    %53 = arith.addf %43, %52 : vector<8x1xf32>
    %54 = arith.truncf %50 : vector<8x18xf32> to vector<8x18xbf16>
    %c0_20 = arith.constant 0 : index
    %c0_21 = arith.constant 0 : index
    %55 = vector.load %arg7[%c0_20, %c0_21] : memref<18x64xbf16, #tpu.memory_space<vmem>>, vector<18x64xbf16>
    %cst_22 = arith.constant dense<0.000000e+00> : vector<8x64xf32>
    %56 = tpu.matmul %54, %55, %cst_22 {dimension_numbers = #tpu.dot_dimension_numbers<[1], [0], [0], [1], [0, 0, 1, 1], [], []>} : vector<8x18xbf16>, vector<18x64xbf16>, vector<8x64xf32> -> vector<8x64xf32>
    %c0_23 = arith.constant 0 : index
    %c0_24 = arith.constant 0 : index
    %57 = vector.load %arg8[%c0_23, %c0_24] : memref<1x64xf32, #tpu.memory_space<vmem>>, vector<1x64xf32>
    %58 = vector.broadcast %57 : vector<1x64xf32> to vector<8x64xf32>
    %59 = arith.addf %56, %58 : vector<8x64xf32>
    %cst_25 = arith.constant dense<0.000000e+00> : vector<64xf32>
    %60 = vector.multi_reduction <add>, %59, %cst_25 [0] : vector<8x64xf32> to vector<64xf32>
    %61 = vector.shape_cast %60 : vector<64xf32> to vector<1x64xf32>
    %cst_26 = arith.constant 8.000000e+00 : f32
    %62 = vector.broadcast %cst_26 : f32 to vector<1x64xf32>
    %63 = arith.divf %61, %62 : vector<1x64xf32>
    %64 = vector.broadcast %63 : vector<1x64xf32> to vector<8x64xf32>
    %65 = arith.subf %59, %64 : vector<8x64xf32>
    %66 = arith.mulf %65, %65 : vector<8x64xf32>
    %cst_27 = arith.constant dense<0.000000e+00> : vector<64xf32>
    %67 = vector.multi_reduction <add>, %66, %cst_27 [0] : vector<8x64xf32> to vector<64xf32>
    %68 = vector.shape_cast %67 : vector<64xf32> to vector<1x64xf32>
    %cst_28 = arith.constant 8.000000e+00 : f32
    %69 = vector.broadcast %cst_28 : f32 to vector<1x64xf32>
    %70 = arith.divf %68, %69 : vector<1x64xf32>
    %71 = vector.broadcast %63 : vector<1x64xf32> to vector<8x64xf32>
    %72 = arith.subf %59, %71 : vector<8x64xf32>
    %cst_29 = arith.constant 1.000000e-03 : f32
    %73 = vector.broadcast %cst_29 : f32 to vector<1x64xf32>
    %74 = arith.addf %70, %73 : vector<1x64xf32>
    %75 = math.rsqrt %74 : vector<1x64xf32>
    %76 = vector.broadcast %75 : vector<1x64xf32> to vector<8x64xf32>
    %77 = arith.mulf %72, %76 : vector<8x64xf32>
    %cst_30 = arith.constant 0.000000e+00 : f32
    %78 = vector.broadcast %cst_30 : f32 to vector<8x64xf32>
    %79 = arith.maximumf %77, %78 : vector<8x64xf32>
    %80 = arith.truncf %79 : vector<8x64xf32> to vector<8x64xbf16>
    %c0_31 = arith.constant 0 : index
    %c0_32 = arith.constant 0 : index
    %81 = vector.load %arg9[%c0_31, %c0_32] : memref<64x512xbf16, #tpu.memory_space<vmem>>, vector<64x512xbf16>
    %cst_33 = arith.constant dense<0.000000e+00> : vector<8x512xf32>
    %82 = tpu.matmul %80, %81, %cst_33 {dimension_numbers = #tpu.dot_dimension_numbers<[1], [0], [0], [1], [0, 0, 1, 1], [], []>} : vector<8x64xbf16>, vector<64x512xbf16>, vector<8x512xf32> -> vector<8x512xf32>
    %c0_34 = arith.constant 0 : index
    %c0_35 = arith.constant 0 : index
    %83 = vector.load %arg10[%c0_34, %c0_35] : memref<1x512xf32, #tpu.memory_space<vmem>>, vector<1x512xf32>
    %84 = vector.broadcast %83 : vector<1x512xf32> to vector<8x512xf32>
    %85 = arith.addf %82, %84 : vector<8x512xf32>
    %86 = vector.extract_strided_slice %85 {offsets = [0, 0], sizes = [8, 256], strides = [1, 1]} : vector<8x512xf32> to vector<8x256xf32>
    %87 = vector.extract_strided_slice %85 {offsets = [0, 256], sizes = [8, 256], strides = [1, 1]} : vector<8x512xf32> to vector<8x256xf32>
    %cst_36 = arith.constant dense<0xFF800000> : vector<8xf32>
    %88 = vector.multi_reduction <maximumf>, %86, %cst_36 [1] : vector<8x256xf32> to vector<8xf32>
    %89 = vector.shape_cast %88 : vector<8xf32> to vector<8x1xf32>
    %90 = vector.broadcast %89 : vector<8x1xf32> to vector<8x256xf32>
    %91 = arith.subf %86, %90 : vector<8x256xf32>
    %92 = math.exp %91 : vector<8x256xf32>
    %cst_37 = arith.constant dense<0.000000e+00> : vector<8xf32>
    %93 = vector.multi_reduction <add>, %92, %cst_37 [1] : vector<8x256xf32> to vector<8xf32>
    %94 = vector.shape_cast %93 : vector<8xf32> to vector<8x1xf32>
    %95 = tpu.reciprocal %94 {approx = true} : vector<8x1xf32> -> vector<8x1xf32>
    %96 = vector.broadcast %95 : vector<8x1xf32> to vector<8x256xf32>
    %97 = arith.mulf %92, %96 : vector<8x256xf32>
    %98 = math.exp %53 : vector<8x1xf32>
    %99 = vector.broadcast %98 : vector<8x1xf32> to vector<8x256xf32>
    %100 = arith.mulf %99, %97 : vector<8x256xf32>
    %c0_38 = arith.constant 0 : index
    %c0_39 = arith.constant 0 : index
    %101 = vector.load %arg11[%c0_38, %c0_39] : memref<1x256xf32, #tpu.memory_space<vmem>>, vector<1x256xf32>
    %102 = math.exp %101 : vector<1x256xf32>
    %cst_40 = arith.constant 1.000000e+00 : f32
    %103 = vector.broadcast %cst_40 : f32 to vector<1x256xf32>
    %104 = arith.addf %102, %103 : vector<1x256xf32>
    %cst_41 = arith.constant 1.000000e+00 : f32
    %105 = vector.broadcast %cst_41 : f32 to vector<1x256xf32>
    %106 = arith.subf %104, %105 : vector<1x256xf32>
    %cst_42 = arith.constant 1.000000e+00 : f32
    %107 = vector.broadcast %cst_42 : f32 to vector<1x256xf32>
    %cst_43 = arith.constant 1.000000e+00 : f32
    %108 = vector.broadcast %cst_43 : f32 to vector<1x256xf32>
    %109 = arith.addf %106, %108 : vector<1x256xf32>
    %110 = tpu.reciprocal %109 {approx = true} : vector<1x256xf32> -> vector<1x256xf32>
    %cst_44 = arith.constant 676.520386 : f32
    %111 = vector.broadcast %cst_44 : f32 to vector<1x256xf32>
    %112 = arith.mulf %111, %110 : vector<1x256xf32>
    %113 = arith.addf %107, %112 : vector<1x256xf32>
    %cst_45 = arith.constant 2.000000e+00 : f32
    %114 = vector.broadcast %cst_45 : f32 to vector<1x256xf32>
    %115 = arith.addf %106, %114 : vector<1x256xf32>
    %116 = tpu.reciprocal %115 {approx = true} : vector<1x256xf32> -> vector<1x256xf32>
    %cst_46 = arith.constant -1259.13916 : f32
    %117 = vector.broadcast %cst_46 : f32 to vector<1x256xf32>
    %118 = arith.mulf %117, %116 : vector<1x256xf32>
    %119 = arith.addf %113, %118 : vector<1x256xf32>
    %cst_47 = arith.constant 3.000000e+00 : f32
    %120 = vector.broadcast %cst_47 : f32 to vector<1x256xf32>
    %121 = arith.addf %106, %120 : vector<1x256xf32>
    %122 = tpu.reciprocal %121 {approx = true} : vector<1x256xf32> -> vector<1x256xf32>
    %cst_48 = arith.constant 771.323425 : f32
    %123 = vector.broadcast %cst_48 : f32 to vector<1x256xf32>
    %124 = arith.mulf %123, %122 : vector<1x256xf32>
    %125 = arith.addf %119, %124 : vector<1x256xf32>
    %cst_49 = arith.constant 4.000000e+00 : f32
    %126 = vector.broadcast %cst_49 : f32 to vector<1x256xf32>
    %127 = arith.addf %106, %126 : vector<1x256xf32>
    %128 = tpu.reciprocal %127 {approx = true} : vector<1x256xf32> -> vector<1x256xf32>
    %cst_50 = arith.constant -176.615036 : f32
    %129 = vector.broadcast %cst_50 : f32 to vector<1x256xf32>
    %130 = arith.mulf %129, %128 : vector<1x256xf32>
    %131 = arith.addf %125, %130 : vector<1x256xf32>
    %cst_51 = arith.constant 5.000000e+00 : f32
    %132 = vector.broadcast %cst_51 : f32 to vector<1x256xf32>
    %133 = arith.addf %106, %132 : vector<1x256xf32>
    %134 = tpu.reciprocal %133 {approx = true} : vector<1x256xf32> -> vector<1x256xf32>
    %cst_52 = arith.constant 12.5073433 : f32
    %135 = vector.broadcast %cst_52 : f32 to vector<1x256xf32>
    %136 = arith.mulf %135, %134 : vector<1x256xf32>
    %137 = arith.addf %131, %136 : vector<1x256xf32>
    %cst_53 = arith.constant 6.000000e+00 : f32
    %138 = vector.broadcast %cst_53 : f32 to vector<1x256xf32>
    %139 = arith.addf %106, %138 : vector<1x256xf32>
    %140 = tpu.reciprocal %139 {approx = true} : vector<1x256xf32> -> vector<1x256xf32>
    %cst_54 = arith.constant -0.138571098 : f32
    %141 = vector.broadcast %cst_54 : f32 to vector<1x256xf32>
    %142 = arith.mulf %141, %140 : vector<1x256xf32>
    %143 = arith.addf %137, %142 : vector<1x256xf32>
    %cst_55 = arith.constant 7.000000e+00 : f32
    %144 = vector.broadcast %cst_55 : f32 to vector<1x256xf32>
    %145 = arith.addf %106, %144 : vector<1x256xf32>
    %146 = tpu.reciprocal %145 {approx = true} : vector<1x256xf32> -> vector<1x256xf32>
    %cst_56 = arith.constant 9.98436917E-6 : f32
    %147 = vector.broadcast %cst_56 : f32 to vector<1x256xf32>
    %148 = arith.mulf %147, %146 : vector<1x256xf32>
    %149 = arith.addf %143, %148 : vector<1x256xf32>
    %cst_57 = arith.constant 8.000000e+00 : f32
    %150 = vector.broadcast %cst_57 : f32 to vector<1x256xf32>
    %151 = arith.addf %106, %150 : vector<1x256xf32>
    %152 = tpu.reciprocal %151 {approx = true} : vector<1x256xf32> -> vector<1x256xf32>
    %cst_58 = arith.constant 1.50563267E-7 : f32
    %153 = vector.broadcast %cst_58 : f32 to vector<1x256xf32>
    %154 = arith.mulf %153, %152 : vector<1x256xf32>
    %155 = arith.addf %149, %154 : vector<1x256xf32>
    %cst_59 = arith.constant 7.000000e+00 : f32
    %156 = vector.broadcast %cst_59 : f32 to vector<1x256xf32>
    %157 = arith.addf %106, %156 : vector<1x256xf32>
    %cst_60 = arith.constant 5.000000e-01 : f32
    %158 = vector.broadcast %cst_60 : f32 to vector<1x256xf32>
    %159 = arith.addf %157, %158 : vector<1x256xf32>
    %cst_61 = arith.constant 6.28318548 : f32
    %160 = math.log %cst_61 : f32
    %cst_62 = arith.constant 5.000000e-01 : f32
    %161 = arith.mulf %cst_62, %160 : f32
    %cst_63 = arith.constant 5.000000e-01 : f32
    %162 = vector.broadcast %cst_63 : f32 to vector<1x256xf32>
    %163 = arith.addf %106, %162 : vector<1x256xf32>
    %164 = math.log %159 : vector<1x256xf32>
    %165 = arith.mulf %163, %164 : vector<1x256xf32>
    %166 = vector.broadcast %161 : f32 to vector<1x256xf32>
    %167 = arith.addf %166, %165 : vector<1x256xf32>
    %168 = arith.subf %167, %159 : vector<1x256xf32>
    %169 = math.log %155 : vector<1x256xf32>
    %170 = arith.addf %168, %169 : vector<1x256xf32>
    %171 = arith.subf %170, %101 : vector<1x256xf32>
    %cst_64 = arith.constant 0.000000e+00 : f32
    %172 = vector.broadcast %cst_64 : f32 to vector<8x256xf32>
    %173 = arith.subf %172, %87 : vector<8x256xf32>
    %cst_65 = arith.constant 0.000000e+00 : f32
    %174 = vector.broadcast %cst_65 : f32 to vector<8x256xf32>
    %175 = arith.maximumf %173, %174 : vector<8x256xf32>
    %176 = math.absf %173 : vector<8x256xf32>
    %cst_66 = arith.constant 0.000000e+00 : f32
    %177 = vector.broadcast %cst_66 : f32 to vector<8x256xf32>
    %178 = arith.subf %177, %176 : vector<8x256xf32>
    %179 = math.exp %178 : vector<8x256xf32>
    %cst_67 = arith.constant 1.000000e+00 : f32
    %180 = vector.broadcast %cst_67 : f32 to vector<8x256xf32>
    %181 = arith.addf %180, %179 : vector<8x256xf32>
    %182 = math.log %181 : vector<8x256xf32>
    %183 = arith.addf %175, %182 : vector<8x256xf32>
    %cst_68 = arith.constant 9.99999993E-9 : f32
    %184 = vector.broadcast %cst_68 : f32 to vector<1x256xf32>
    %185 = arith.addf %102, %184 : vector<1x256xf32>
    %186 = math.log %185 : vector<1x256xf32>
    %187 = vector.broadcast %102 : vector<1x256xf32> to vector<8x256xf32>
    %188 = arith.addf %187, %100 : vector<8x256xf32>
    %cst_69 = arith.constant 9.99999993E-9 : f32
    %189 = vector.broadcast %cst_69 : f32 to vector<8x256xf32>
    %190 = arith.addf %188, %189 : vector<8x256xf32>
    %191 = math.log %190 : vector<8x256xf32>
    %cst_70 = arith.constant 0.000000e+00 : f32
    %192 = vector.broadcast %cst_70 : f32 to vector<8x256xf32>
    %193 = arith.subf %192, %87 : vector<8x256xf32>
    %194 = vector.broadcast %186 : vector<1x256xf32> to vector<8x256xf32>
    %195 = arith.subf %194, %191 : vector<8x256xf32>
    %196 = vector.broadcast %102 : vector<1x256xf32> to vector<8x256xf32>
    %197 = arith.mulf %196, %195 : vector<8x256xf32>
    %198 = arith.addf %193, %197 : vector<8x256xf32>
    %cst_71 = arith.constant 0.000000e+00 : f32
    %199 = vector.broadcast %cst_71 : f32 to vector<8x256xf32>
    %200 = arith.maximumf %198, %199 : vector<8x256xf32>
    %201 = math.absf %198 : vector<8x256xf32>
    %cst_72 = arith.constant 0.000000e+00 : f32
    %202 = vector.broadcast %cst_72 : f32 to vector<8x256xf32>
    %203 = arith.subf %202, %201 : vector<8x256xf32>
    %204 = math.exp %203 : vector<8x256xf32>
    %cst_73 = arith.constant 1.000000e+00 : f32
    %205 = vector.broadcast %cst_73 : f32 to vector<8x256xf32>
    %206 = arith.addf %205, %204 : vector<8x256xf32>
    %207 = math.log %206 : vector<8x256xf32>
    %208 = arith.addf %200, %207 : vector<8x256xf32>
    %209 = arith.subf %208, %183 : vector<8x256xf32>
    %cst_74 = arith.constant 0.000000e+00 : f32
    %210 = vector.broadcast %cst_74 : f32 to vector<8x256xf32>
    %211 = arith.subf %210, %183 : vector<8x256xf32>
    %212 = arith.addf %211, %198 : vector<8x256xf32>
    %cst_75 = arith.constant 9.99999993E-9 : f32
    %213 = vector.broadcast %cst_75 : f32 to vector<8x256xf32>
    %214 = arith.addf %100, %213 : vector<8x256xf32>
    %215 = math.log %214 : vector<8x256xf32>
    %216 = arith.subf %215, %191 : vector<8x256xf32>
    %217 = arith.mulf %0, %216 : vector<8x256xf32>
    %218 = arith.addf %212, %217 : vector<8x256xf32>
    %219 = vector.broadcast %102 : vector<1x256xf32> to vector<8x256xf32>
    %220 = arith.addf %0, %219 : vector<8x256xf32>
    %cst_76 = arith.constant 1.000000e+00 : f32
    %221 = vector.broadcast %cst_76 : f32 to vector<8x256xf32>
    %222 = arith.subf %220, %221 : vector<8x256xf32>
    %cst_77 = arith.constant 1.000000e+00 : f32
    %223 = vector.broadcast %cst_77 : f32 to vector<8x256xf32>
    %cst_78 = arith.constant 1.000000e+00 : f32
    %224 = vector.broadcast %cst_78 : f32 to vector<8x256xf32>
    %225 = arith.addf %222, %224 : vector<8x256xf32>
    %226 = tpu.reciprocal %225 {approx = true} : vector<8x256xf32> -> vector<8x256xf32>
    %cst_79 = arith.constant 676.520386 : f32
    %227 = vector.broadcast %cst_79 : f32 to vector<8x256xf32>
    %228 = arith.mulf %227, %226 : vector<8x256xf32>
    %229 = arith.addf %223, %228 : vector<8x256xf32>
    %cst_80 = arith.constant 2.000000e+00 : f32
    %230 = vector.broadcast %cst_80 : f32 to vector<8x256xf32>
    %231 = arith.addf %222, %230 : vector<8x256xf32>
    %232 = tpu.reciprocal %231 {approx = true} : vector<8x256xf32> -> vector<8x256xf32>
    %cst_81 = arith.constant -1259.13916 : f32
    %233 = vector.broadcast %cst_81 : f32 to vector<8x256xf32>
    %234 = arith.mulf %233, %232 : vector<8x256xf32>
    %235 = arith.addf %229, %234 : vector<8x256xf32>
    %cst_82 = arith.constant 3.000000e+00 : f32
    %236 = vector.broadcast %cst_82 : f32 to vector<8x256xf32>
    %237 = arith.addf %222, %236 : vector<8x256xf32>
    %238 = tpu.reciprocal %237 {approx = true} : vector<8x256xf32> -> vector<8x256xf32>
    %cst_83 = arith.constant 771.323425 : f32
    %239 = vector.broadcast %cst_83 : f32 to vector<8x256xf32>
    %240 = arith.mulf %239, %238 : vector<8x256xf32>
    %241 = arith.addf %235, %240 : vector<8x256xf32>
    %cst_84 = arith.constant 4.000000e+00 : f32
    %242 = vector.broadcast %cst_84 : f32 to vector<8x256xf32>
    %243 = arith.addf %222, %242 : vector<8x256xf32>
    %244 = tpu.reciprocal %243 {approx = true} : vector<8x256xf32> -> vector<8x256xf32>
    %cst_85 = arith.constant -176.615036 : f32
    %245 = vector.broadcast %cst_85 : f32 to vector<8x256xf32>
    %246 = arith.mulf %245, %244 : vector<8x256xf32>
    %247 = arith.addf %241, %246 : vector<8x256xf32>
    %cst_86 = arith.constant 5.000000e+00 : f32
    %248 = vector.broadcast %cst_86 : f32 to vector<8x256xf32>
    %249 = arith.addf %222, %248 : vector<8x256xf32>
    %250 = tpu.reciprocal %249 {approx = true} : vector<8x256xf32> -> vector<8x256xf32>
    %cst_87 = arith.constant 12.5073433 : f32
    %251 = vector.broadcast %cst_87 : f32 to vector<8x256xf32>
    %252 = arith.mulf %251, %250 : vector<8x256xf32>
    %253 = arith.addf %247, %252 : vector<8x256xf32>
    %cst_88 = arith.constant 6.000000e+00 : f32
    %254 = vector.broadcast %cst_88 : f32 to vector<8x256xf32>
    %255 = arith.addf %222, %254 : vector<8x256xf32>
    %256 = tpu.reciprocal %255 {approx = true} : vector<8x256xf32> -> vector<8x256xf32>
    %cst_89 = arith.constant -0.138571098 : f32
    %257 = vector.broadcast %cst_89 : f32 to vector<8x256xf32>
    %258 = arith.mulf %257, %256 : vector<8x256xf32>
    %259 = arith.addf %253, %258 : vector<8x256xf32>
    %cst_90 = arith.constant 7.000000e+00 : f32
    %260 = vector.broadcast %cst_90 : f32 to vector<8x256xf32>
    %261 = arith.addf %222, %260 : vector<8x256xf32>
    %262 = tpu.reciprocal %261 {approx = true} : vector<8x256xf32> -> vector<8x256xf32>
    %cst_91 = arith.constant 9.98436917E-6 : f32
    %263 = vector.broadcast %cst_91 : f32 to vector<8x256xf32>
    %264 = arith.mulf %263, %262 : vector<8x256xf32>
    %265 = arith.addf %259, %264 : vector<8x256xf32>
    %cst_92 = arith.constant 8.000000e+00 : f32
    %266 = vector.broadcast %cst_92 : f32 to vector<8x256xf32>
    %267 = arith.addf %222, %266 : vector<8x256xf32>
    %268 = tpu.reciprocal %267 {approx = true} : vector<8x256xf32> -> vector<8x256xf32>
    %cst_93 = arith.constant 1.50563267E-7 : f32
    %269 = vector.broadcast %cst_93 : f32 to vector<8x256xf32>
    %270 = arith.mulf %269, %268 : vector<8x256xf32>
    %271 = arith.addf %265, %270 : vector<8x256xf32>
    %cst_94 = arith.constant 7.000000e+00 : f32
    %272 = vector.broadcast %cst_94 : f32 to vector<8x256xf32>
    %273 = arith.addf %222, %272 : vector<8x256xf32>
    %cst_95 = arith.constant 5.000000e-01 : f32
    %274 = vector.broadcast %cst_95 : f32 to vector<8x256xf32>
    %275 = arith.addf %273, %274 : vector<8x256xf32>
    %cst_96 = arith.constant 6.28318548 : f32
    %276 = math.log %cst_96 : f32
    %cst_97 = arith.constant 5.000000e-01 : f32
    %277 = arith.mulf %cst_97, %276 : f32
    %cst_98 = arith.constant 5.000000e-01 : f32
    %278 = vector.broadcast %cst_98 : f32 to vector<8x256xf32>
    %279 = arith.addf %222, %278 : vector<8x256xf32>
    %280 = math.log %275 : vector<8x256xf32>
    %281 = arith.mulf %279, %280 : vector<8x256xf32>
    %282 = vector.broadcast %277 : f32 to vector<8x256xf32>
    %283 = arith.addf %282, %281 : vector<8x256xf32>
    %284 = arith.subf %283, %275 : vector<8x256xf32>
    %285 = math.log %271 : vector<8x256xf32>
    %286 = arith.addf %284, %285 : vector<8x256xf32>
    %287 = arith.addf %218, %286 : vector<8x256xf32>
    %288 = vector.broadcast %171 : vector<1x256xf32> to vector<8x256xf32>
    %289 = arith.subf %287, %288 : vector<8x256xf32>
    %c0_99 = arith.constant 0 : index
    %c0_100 = arith.constant 0 : index
    %290 = vector.load %arg1[%c0_99, %c0_100] : memref<8x256xf32, #tpu.memory_space<vmem>>, vector<8x256xf32>
    %291 = arith.subf %289, %290 : vector<8x256xf32>
    %cst_101 = arith.constant 9.99999993E-9 : f32
    %292 = vector.broadcast %cst_101 : f32 to vector<8x256xf32>
    %293 = arith.cmpf olt, %0, %292 : vector<8x256xf32>
    %cst_102 = arith.constant 0.000000e+00 : f32
    %294 = vector.broadcast %cst_102 : f32 to vector<8x256xf32>
    %295 = arith.select %293, %209, %294 : vector<8x256xi1>, vector<8x256xf32>
    %cst_103 = arith.constant 9.99999993E-9 : f32
    %296 = vector.broadcast %cst_103 : f32 to vector<8x256xf32>
    %297 = arith.cmpf ogt, %0, %296 : vector<8x256xf32>
    %cst_104 = arith.constant 0.000000e+00 : f32
    %298 = vector.broadcast %cst_104 : f32 to vector<8x256xf32>
    %299 = arith.select %297, %291, %298 : vector<8x256xi1>, vector<8x256xf32>
    %300 = arith.addf %295, %299 : vector<8x256xf32>
    %cst_105 = arith.constant dense<0.000000e+00> : vector<8xf32>
    %301 = vector.multi_reduction <add>, %300, %cst_105 [1] : vector<8x256xf32> to vector<8xf32>
    %302 = vector.shape_cast %301 : vector<8xf32> to vector<8x1xf32>
    %cst_106 = arith.constant 0.000000e+00 : f32
    %303 = vector.broadcast %cst_106 : f32 to vector<8x1xf32>
    %304 = arith.subf %303, %302 : vector<8x1xf32>
    %305 = arith.mulf %38, %38 : vector<8x18xf32>
    %306 = arith.addf %42, %305 : vector<8x18xf32>
    %cst_107 = arith.constant 1.000000e+00 : f32
    %307 = vector.broadcast %cst_107 : f32 to vector<8x18xf32>
    %308 = arith.subf %306, %307 : vector<8x18xf32>
    %309 = math.log %42 : vector<8x18xf32>
    %310 = arith.subf %308, %309 : vector<8x18xf32>
    %cst_108 = arith.constant 5.000000e-01 : f32
    %311 = vector.broadcast %cst_108 : f32 to vector<8x18xf32>
    %312 = arith.mulf %311, %310 : vector<8x18xf32>
    %cst_109 = arith.constant dense<0.000000e+00> : vector<8xf32>
    %313 = vector.multi_reduction <add>, %312, %cst_109 [1] : vector<8x18xf32> to vector<8xf32>
    %314 = vector.shape_cast %313 : vector<8xf32> to vector<8x1xf32>
    %315 = arith.divf %47, %3 : vector<8x1xf32>
    %316 = arith.subf %43, %2 : vector<8x1xf32>
    %317 = arith.mulf %316, %316 : vector<8x1xf32>
    %318 = arith.divf %317, %3 : vector<8x1xf32>
    %319 = arith.addf %315, %318 : vector<8x1xf32>
    %cst_110 = arith.constant 1.000000e+00 : f32
    %320 = vector.broadcast %cst_110 : f32 to vector<8x1xf32>
    %321 = arith.subf %319, %320 : vector<8x1xf32>
    %322 = math.log %315 : vector<8x1xf32>
    %323 = arith.subf %321, %322 : vector<8x1xf32>
    %cst_111 = arith.constant 5.000000e-01 : f32
    %324 = vector.broadcast %cst_111 : f32 to vector<8x1xf32>
    %325 = arith.mulf %324, %323 : vector<8x1xf32>
    %cst_112 = arith.constant dense<0.000000e+00> : vector<8xf32>
    %326 = vector.multi_reduction <add>, %325, %cst_112 [1] : vector<8x1xf32> to vector<8xf32>
    %327 = vector.shape_cast %326 : vector<8xf32> to vector<8x1xf32>
    %328 = arith.addf %327, %314 : vector<8x1xf32>
    %329 = tpu.iota {dimensions = array<i32: 1>} : vector<8x128xi32>
    %c0_i32 = arith.constant 0 : i32
    %330 = vector.broadcast %c0_i32 : i32 to vector<8x128xi32>
    %331 = arith.cmpi eq, %329, %330 : vector<8x128xi32>
    %cst_113 = arith.constant 0.000000e+00 : f32
    %332 = vector.shape_cast %304 : vector<8x1xf32> to vector<8x1xf32>
    %333 = vector.broadcast %332 : vector<8x1xf32> to vector<8x128xf32>
    %334 = vector.broadcast %cst_113 : f32 to vector<8x128xf32>
    %335 = arith.select %331, %333, %334 : vector<8x128xi1>, vector<8x128xf32>
    %c1_i32 = arith.constant 1 : i32
    %336 = vector.broadcast %c1_i32 : i32 to vector<8x128xi32>
    %337 = arith.cmpi eq, %329, %336 : vector<8x128xi32>
    %cst_114 = arith.constant 0.000000e+00 : f32
    %338 = vector.shape_cast %328 : vector<8x1xf32> to vector<8x1xf32>
    %339 = vector.broadcast %338 : vector<8x1xf32> to vector<8x128xf32>
    %340 = vector.broadcast %cst_114 : f32 to vector<8x128xf32>
    %341 = arith.select %337, %339, %340 : vector<8x128xi1>, vector<8x128xf32>
    %342 = arith.addf %335, %341 : vector<8x128xf32>
    %c0_115 = arith.constant 0 : index
    %c0_116 = arith.constant 0 : index
    %343 = vector.load %arg12[%c0_115, %c0_116] : memref<8x128xf32, #tpu.memory_space<vmem>>, vector<8x128xf32>
    tpu.vector_store %arg12[%c0_115, %c0_116], %342 {strides = array<i32>} : memref<8x128xf32, #tpu.memory_space<vmem>>, vector<8x128xf32>,
    return
  }
}

</mosaic_0001>

<llo_original>
// kernel: gaatac_forward.1
$region0: #{gaatac_forward.1}
  #allocation0 [shape = 'u32[]', space=smem, size = 0x4, offset = 0x4, fixed_abs, tag = 'smem constant byte address 0x4 - core index']
  #allocation1 [shape = 'u32[144,128]{1,0:T(1,128)}', space=vmem, size = 0x12000, scoped, tag = 'internal scratch']
  %s0 = inlined_call_operand.vmem [shape: f32[8,256], index: 0, kind: input, shape index: {}]
  %s1 = inlined_call_operand.vmem [shape: f32[8,256], index: 1, kind: input, shape index: {}]
  %s2 = inlined_call_operand.vmem [shape: f32[8,128], index: 2, kind: input, shape index: {}]
  %s3 = inlined_call_operand.hbm [shape: bf16[256,128], index: 3, kind: input, shape index: {}]
  %s4 = inlined_call_operand.hbm [shape: f32[1,128], index: 4, kind: input, shape index: {}]
  %s5 = inlined_call_operand.vmem [shape: bf16[128,128], index: 5, kind: input, shape index: {}]
  %s6 = inlined_call_operand.hbm [shape: f32[1,128], index: 6, kind: input, shape index: {}]
  %s7 = inlined_call_operand.vmem [shape: bf16[18,64], index: 7, kind: input, shape index: {}]
  %s8 = inlined_call_operand.hbm [shape: f32[1,64], index: 8, kind: input, shape index: {}]
  %s9 = inlined_call_operand.hbm [shape: bf16[64,512], index: 9, kind: input, shape index: {}]
  %s10 = inlined_call_operand.hbm [shape: f32[1,512], index: 10, kind: input, shape index: {}]
  %s11 = inlined_call_operand.vmem [shape: f32[1,256], index: 11, kind: input, shape index: {}]
  %s12 = inlined_call_operand.vmem [shape: f32[8,128], index: 12, kind: output, shape index: {}]
  %s13 = sld [smem:[#allocation0]]
  $region82: #{gaatac_forward.1} parent=0
    _
  %s15 = ssub.s32 1, %s13
  %s16 = scalar_select 0, %s15, %s13
  $region1: #{gaatac_forward.1} parent=0
    #allocation2 [shape = 'u8[65536]{0}', space=vmem, size = 0x10000, scoped, tag = 'input window, operand 3, single buffered']
    #allocation3 [shape = 's32[1]{0}', space=sflag, size = 0x4, scoped, tag = 'scoped memory for gaatac_forward.1']
    #allocation4 [shape = 'u8[512]{0}', space=vmem, size = 0x400, scoped, tag = 'input window, operand 4, single buffered']
    #allocation5 [shape = 's32[1]{0}', space=sflag, size = 0x4, scoped, tag = 'scoped memory for gaatac_forward.1']
    #allocation6 [shape = 'u8[512]{0}', space=vmem, size = 0x400, scoped, tag = 'input window, operand 6, single buffered']
    #allocation7 [shape = 'u8[512]{0}', space=vmem, size = 0x400, scoped, tag = 'input window, operand 8, single buffered']
    #allocation8 [shape = 's32[1]{0}', space=sflag, size = 0x4, scoped, tag = 'scoped memory for gaatac_forward.1']
    #allocation9 [shape = 'u8[65536]{0}', space=vmem, size = 0x10000, scoped, tag = 'input window, operand 9, single buffered']
    #allocation10 [shape = 'u8[2048]{0}', space=vmem, size = 0x800, scoped, tag = 'input window, operand 10, single buffered']
    #allocation11 [shape = 's32[1]{0}', space=sflag, size = 0x4, scoped, tag = 'scoped memory for gaatac_forward.1']
    %17 = vsyncpa [#allocation3], 0
    %18 = vsyncpa [#allocation5], 0
    %19 = vsyncpa [#allocation8], 0
    %20 = vsyncpa [#allocation11], 0
    // Predicated region
    $region2: #{gaatac_forward.1} parent=1 // pred_check
      _
    $region3: #{gaatac_forward.1} parent=1 // pred_check_branch
      %22 = sbr.rel (0) target = $region5
    $region4: #{gaatac_forward.1} parent=1 // pred_region
      _
    $region5: #{gaatac_forward.1} parent=1 // pred_fallthru
      _
    // Predicated region
    $region6: #{gaatac_forward.1} parent=1 // pred_check
      _
    $region7: #{gaatac_forward.1} parent=1 // pred_check_branch
      %24 = sbr.rel (0) target = $region9
    $region8: #{gaatac_forward.1} parent=1 // pred_region
      _
    $region9: #{gaatac_forward.1} parent=1 // pred_fallthru
      _
    // Predicated region
    $region10: #{gaatac_forward.1} parent=1 // pred_check
      _
    $region11: #{gaatac_forward.1} parent=1 // pred_check_branch
      %26 = sbr.rel (0) target = $region13
    $region12: #{gaatac_forward.1} parent=1 // pred_region
      _
    $region13: #{gaatac_forward.1} parent=1 // pred_fallthru
      _
    // Predicated region
    $region14: #{gaatac_forward.1} parent=1 // pred_check
      _
    $region15: #{gaatac_forward.1} parent=1 // pred_check_branch
      %28 = sbr.rel (0) target = $region17
    $region16: #{gaatac_forward.1} parent=1 // pred_region
      %s30 = ssub.s32 2048, 2048
      %31 = vsyncadd [#allocation3], %s30
      %s32 = sshll.u32 [#allocation2], 4
      %s33 = int_to_ptr.vmem [resolvable:$true] %s32
      %38 = dma.hbm_to_vmem [thread:$0]  %s3, 2048, %s33, [#allocation3], 64, 64, 4
    $region17: #{gaatac_forward.1} parent=1 // pred_fallthru
      _
    // Predicated region
    $region18: #{gaatac_forward.1} parent=1 // pred_check
      _
    $region19: #{gaatac_forward.1} parent=1 // pred_check_branch
      %40 = sbr.rel (0) target = $region21
    $region20: #{gaatac_forward.1} parent=1 // pred_region
      %s42 = ssub.s32 16, 16
      %43 = vsyncadd [#allocation5], %s42
      %s45 = sshll.u32 [#allocation4], 4
      %s46 = int_to_ptr.vmem [resolvable:$true] %s45
      %48 = dma.hbm_to_vmem [thread:$0]  %s4, 16, %s46, [#allocation5]
    $region21: #{gaatac_forward.1} parent=1 // pred_fallthru
      _
    // Predicated region
    $region22: #{gaatac_forward.1} parent=1 // pred_check
      _
    $region23: #{gaatac_forward.1} parent=1 // pred_check_branch
      %50 = sbr.rel (0) target = $region25
    $region24: #{gaatac_forward.1} parent=1 // pred_region
      _
    $region25: #{gaatac_forward.1} parent=1 // pred_fallthru
      _
    // Predicated region
    $region26: #{gaatac_forward.1} parent=1 // pred_check
      _
    $region27: #{gaatac_forward.1} parent=1 // pred_check_branch
      %52 = sbr.rel (0) target = $region29
    $region28: #{gaatac_forward.1} parent=1 // pred_region
      %s54 = ssub.s32 16, 16
      %55 = vsyncadd [#allocation5], %s54
      %s57 = sshll.u32 [#allocation6], 4
      %s58 = int_to_ptr.vmem [resolvable:$true] %s57
      %60 = dma.hbm_to_vmem [thread:$0]  %s6, 16, %s58, [#allocation5]
    $region29: #{gaatac_forward.1} parent=1 // pred_fallthru
      _
    // Predicated region
    $region30: #{gaatac_forward.1} parent=1 // pred_check
      _
    $region31: #{gaatac_forward.1} parent=1 // pred_check_branch
      %62 = sbr.rel (0) target = $region33
    $region32: #{gaatac_forward.1} parent=1 // pred_region
      _
    $region33: #{gaatac_forward.1} parent=1 // pred_fallthru
      _
    // Predicated region
    $region34: #{gaatac_forward.1} parent=1 // pred_check
      _
    $region35: #{gaatac_forward.1} parent=1 // pred_check_branch
      %64 = sbr.rel (0) target = $region37
    $region36: #{gaatac_forward.1} parent=1 // pred_region
      %s66 = ssub.s32 16, 16
      %67 = vsyncadd [#allocation8], %s66
      %s69 = sshll.u32 [#allocation7], 4
      %s70 = int_to_ptr.vmem [resolvable:$true] %s69
      %72 = dma.hbm_to_vmem [thread:$0]  %s8, 16, %s70, [#allocation8]
    $region37: #{gaatac_forward.1} parent=1 // pred_fallthru
      _
    // Predicated region
    $region38: #{gaatac_forward.1} parent=1 // pred_check
      _
    $region39: #{gaatac_forward.1} parent=1 // pred_check_branch
      %74 = sbr.rel (0) target = $region41
    $region40: #{gaatac_forward.1} parent=1 // pred_region
      %s76 = ssub.s32 2048, 2048
      %77 = vsyncadd [#allocation8], %s76
      %s78 = sshll.u32 [#allocation9], 4
      %s79 = int_to_ptr.vmem [resolvable:$true] %s78
      %84 = dma.hbm_to_vmem [thread:$0]  %s9, 2048, %s79, [#allocation8], 256, 256, 16
    $region41: #{gaatac_forward.1} parent=1 // pred_fallthru
      _
    // Predicated region
    $region42: #{gaatac_forward.1} parent=1 // pred_check
      _
    $region43: #{gaatac_forward.1} parent=1 // pred_check_branch
      %86 = sbr.rel (0) target = $region45
    $region44: #{gaatac_forward.1} parent=1 // pred_region
      %s88 = ssub.s32 64, 64
      %89 = vsyncadd [#allocation11], %s88
      %s91 = sshll.u32 [#allocation10], 4
      %s92 = int_to_ptr.vmem [resolvable:$true] %s91
      %94 = dma.hbm_to_vmem [thread:$0]  %s10, 64, %s92, [#allocation11]
    $region45: #{gaatac_forward.1} parent=1 // pred_fallthru
      _
    // Predicated region
    $region46: #{gaatac_forward.1} parent=1 // pred_check
      _
    $region47: #{gaatac_forward.1} parent=1 // pred_check_branch
      %96 = sbr.rel (0) target = $region49
    $region48: #{gaatac_forward.1} parent=1 // pred_region
      _
    $region49: #{gaatac_forward.1} parent=1 // pred_fallthru
      _
    // Predicated region
    $region50: #{gaatac_forward.1} parent=1 // pred_check
      _
    $region51: #{gaatac_forward.1} parent=1 // pred_check_branch
      %98 = sbr.rel (0) target = $region53
    $region52: #{gaatac_forward.1} parent=1 // pred_region
      %99 = dma.done [#allocation3], 2048
    $region53: #{gaatac_forward.1} parent=1 // pred_fallthru
      _
    // Predicated region
    $region54: #{gaatac_forward.1} parent=1 // pred_check
      _
    $region55: #{gaatac_forward.1} parent=1 // pred_check_branch
      %101 = sbr.rel (0) target = $region57
    $region56: #{gaatac_forward.1} parent=1 // pred_region
      %102 = dma.done [#allocation5], 16
    $region57: #{gaatac_forward.1} parent=1 // pred_fallthru
      _
    // Predicated region
    $region58: #{gaatac_forward.1} parent=1 // pred_check
      _
    $region59: #{gaatac_forward.1} parent=1 // pred_check_branch
      %104 = sbr.rel (0) target = $region61
    $region60: #{gaatac_forward.1} parent=1 // pred_region
      %105 = dma.done [#allocation5], 16
    $region61: #{gaatac_forward.1} parent=1 // pred_fallthru
      _
    // Predicated region
    $region62: #{gaatac_forward.1} parent=1 // pred_check
      _
    $region63: #{gaatac_forward.1} parent=1 // pred_check_branch
      %107 = sbr.rel (0) target = $region65
    $region64: #{gaatac_forward.1} parent=1 // pred_region
      %108 = dma.done [#allocation8], 16
    $region65: #{gaatac_forward.1} parent=1 // pred_fallthru
      _
    // Predicated region
    $region66: #{gaatac_forward.1} parent=1 // pred_check
      _
    $region67: #{gaatac_forward.1} parent=1 // pred_check_branch
      %110 = sbr.rel (0) target = $region69
    $region68: #{gaatac_forward.1} parent=1 // pred_region
      %111 = dma.done [#allocation8], 2048
    $region69: #{gaatac_forward.1} parent=1 // pred_fallthru
      _
    // Predicated region
    $region70: #{gaatac_forward.1} parent=1 // pred_check
      _
    $region71: #{gaatac_forward.1} parent=1 // pred_check_branch
      %113 = sbr.rel (0) target = $region73
    $region72: #{gaatac_forward.1} parent=1 // pred_region
      %114 = dma.done [#allocation11], 64
    $region73: #{gaatac_forward.1} parent=1 // pred_fallthru
      _
    %v116 = vld [vmem:[%s0] sm:$0xff]
    %v117 = vld [vmem:[%s0 + $0x8] sm:$0xff]
    %v118 = vld [vmem:[%s2] sm:$0xff]
    %v119 = vpack.c.bf16 %v116, %v116
    %v120 = vpack.c.bf16 %v117, %v117
    %v121 = vld [vmem:[#allocation2] sm:$0xf]
    %v122 = vld [vmem:[#allocation2 + $0x4] sm:$0xf]
    %v123 = vld [vmem:[#allocation2 + $0x8] sm:$0xf]
    %v124 = vld [vmem:[#allocation2 + $0xc] sm:$0xf]
    %v125 = vld [vmem:[#allocation2 + $0x10] sm:$0xf]
    %v126 = vld [vmem:[#allocation2 + $0x14] sm:$0xf]
    %v127 = vld [vmem:[#allocation2 + $0x18] sm:$0xf]
    %v128 = vld [vmem:[#allocation2 + $0x1c] sm:$0xf]
    %v129 = vld [vmem:[#allocation2 + $0x20] sm:$0xf]
    %v130 = vld [vmem:[#allocation2 + $0x24] sm:$0xf]
    %v131 = vld [vmem:[#allocation2 + $0x28] sm:$0xf]
    %v132 = vld [vmem:[#allocation2 + $0x2c] sm:$0xf]
    %v133 = vld [vmem:[#allocation2 + $0x30] sm:$0xf]
    %v134 = vld [vmem:[#allocation2 + $0x34] sm:$0xf]
    %v135 = vld [vmem:[#allocation2 + $0x38] sm:$0xf]
    %v136 = vld [vmem:[#allocation2 + $0x3c] sm:$0xf]
    %v137 = vld [vmem:[#allocation2 + $0x40] sm:$0xf]
    %v138 = vld [vmem:[#allocation2 + $0x44] sm:$0xf]
    %v139 = vld [vmem:[#allocation2 + $0x48] sm:$0xf]
    %v140 = vld [vmem:[#allocation2 + $0x4c] sm:$0xf]
    %v141 = vld [vmem:[#allocation2 + $0x50] sm:$0xf]
    %v142 = vld [vmem:[#allocation2 + $0x54] sm:$0xf]
    %v143 = vld [vmem:[#allocation2 + $0x58] sm:$0xf]
    %v144 = vld [vmem:[#allocation2 + $0x5c] sm:$0xf]
    %v145 = vld [vmem:[#allocation2 + $0x60] sm:$0xf]
    %v146 = vld [vmem:[#allocation2 + $0x64] sm:$0xf]
    %v147 = vld [vmem:[#allocation2 + $0x68] sm:$0xf]
    %v148 = vld [vmem:[#allocation2 + $0x6c] sm:$0xf]
    %v149 = vld [vmem:[#allocation2 + $0x70] sm:$0xf]
    %v150 = vld [vmem:[#allocation2 + $0x74] sm:$0xf]
    %v151 = vld [vmem:[#allocation2 + $0x78] sm:$0xf]
    %v152 = vld [vmem:[#allocation2 + $0x7c] sm:$0xf]
    %v153 = vld [vmem:[#allocation4] sm:$0x1]
    %v155 = vlaneseq
    %v156 = vshrl.u32 %v155, 7
    %v157 = vsub.s32 0, %v156
    %v158 = vrot.slane %v153, %v157
    %v192 = vunpack.c.l.b16 %v121
    %v193 = vunpack.c.l.b16 %v122
    %v194 = vunpack.c.l.b16 %v123
    %v195 = vunpack.c.l.b16 %v124
    %v196 = vunpack.c.l.b16 %v125
    %v197 = vunpack.c.l.b16 %v126
    %v198 = vunpack.c.l.b16 %v127
    %v199 = vunpack.c.l.b16 %v128
    %v200 = vunpack.c.l.b16 %v129
    %v201 = vunpack.c.l.b16 %v130
    %v202 = vunpack.c.l.b16 %v131
    %v203 = vunpack.c.l.b16 %v132
    %v204 = vunpack.c.l.b16 %v133
    %v205 = vunpack.c.l.b16 %v134
    %v206 = vunpack.c.l.b16 %v135
    %v207 = vunpack.c.l.b16 %v136
    %v208 = vunpack.c.l.b16 %v137
    %v209 = vunpack.c.l.b16 %v138
    %v210 = vunpack.c.l.b16 %v139
    %v211 = vunpack.c.l.b16 %v140
    %v212 = vunpack.c.l.b16 %v141
    %v213 = vunpack.c.l.b16 %v142
    %v214 = vunpack.c.l.b16 %v143
    %v215 = vunpack.c.l.b16 %v144
    %v216 = vunpack.c.l.b16 %v145
    %v217 = vunpack.c.l.b16 %v146
    %v218 = vunpack.c.l.b16 %v147
    %v219 = vunpack.c.l.b16 %v148
    %v220 = vunpack.c.l.b16 %v149
    %v221 = vunpack.c.l.b16 %v150
    %v222 = vunpack.c.l.b16 %v151
    %v223 = vunpack.c.l.b16 %v152
    %v224 = vpack.c.b16 %v193, %v192
    %v225 = vpack.c.b16 %v195, %v194
    %v226 = vpack.c.b16 %v197, %v196
    %v227 = vpack.c.b16 %v199, %v198
    %v228 = vpack.c.b16 %v201, %v200
    %v229 = vpack.c.b16 %v203, %v202
    %v230 = vpack.c.b16 %v205, %v204
    %v231 = vpack.c.b16 %v207, %v206
    %v232 = vpack.c.b16 %v209, %v208
    %v233 = vpack.c.b16 %v211, %v210
    %v234 = vpack.c.b16 %v213, %v212
    %v235 = vpack.c.b16 %v215, %v214
    %v236 = vpack.c.b16 %v217, %v216
    %v237 = vpack.c.b16 %v219, %v218
    %v238 = vpack.c.b16 %v221, %v220
    %v239 = vpack.c.b16 %v223, %v222
    %256 = vmatprep.subr.bf16.mxu0 0
    %257 = vmatpush1.bf16.msra.mxu0 %v224
    %258 = vmatprep.subr.bf16.mxu0 0
    %259 = vmatpush1.bf16.msra.mxu0 %v225
    %260 = vmatprep.subr.bf16.mxu0 0
    %261 = vmatpush1.bf16.msra.mxu0 %v226
    %262 = vmatprep.subr.bf16.mxu0 0
    %263 = vmatpush1.bf16.msra.mxu0 %v227
    %264 = vmatprep.subr.bf16.mxu0 0
    %265 = vmatpush1.bf16.msra.mxu0 %v228
    %266 = vmatprep.subr.bf16.mxu0 0
    %267 = vmatpush1.bf16.msra.mxu0 %v229
    %268 = vmatprep.subr.bf16.mxu0 0
    %269 = vmatpush1.bf16.msra.mxu0 %v230
    %270 = vmatprep.subr.bf16.mxu0 0
    %271 = vmatpush1.bf16.msra.mxu0 %v231
    %272 = vmatprep.subr.bf16.mxu0 0
    %273 = vmatpush1.bf16.msra.mxu0 %v232
    %274 = vmatprep.subr.bf16.mxu0 0
    %275 = vmatpush1.bf16.msra.mxu0 %v233
    %276 = vmatprep.subr.bf16.mxu0 0
    %277 = vmatpush1.bf16.msra.mxu0 %v234
    %278 = vmatprep.subr.bf16.mxu0 0
    %279 = vmatpush1.bf16.msra.mxu0 %v235
    %280 = vmatprep.subr.bf16.mxu0 0
    %281 = vmatpush1.bf16.msra.mxu0 %v236
    %282 = vmatprep.subr.bf16.mxu0 0
    %283 = vmatpush1.bf16.msra.mxu0 %v237
    %284 = vmatprep.subr.bf16.mxu0 0
    %285 = vmatpush1.bf16.msra.mxu0 %v238
    %286 = vmatprep.subr.bf16.mxu0 0
    %287 = vmatpush1.bf16.msra.mxu0 %v239
    %288 = vmatprep.mubr.bf16.mxu0 %v120
    %289 = vmatmul.mubr.bf16.gmra.mrb[0].mxu0 %v119
    %v290 = vpop.f32.mrb[0].mxu0
    %v291 = vadd.f32 %v158, %v290
    %v292 = vpop.f32.mrb[0].mxu0
    %v293 = vpop.f32.mrb[0].mxu0
    %v294 = vpop.f32.mrb[0].mxu0
    %295 = vdwg.mxu0
    %v296 = vrot.slane %v291, 4
    %v297 = vadd.f32 %v291, %v296
    %v298 = vrot.slane %v297, 2
    %v299 = vadd.f32 %v297, %v298
    %v300 = vrot.slane %v299, 1
    %v301 = vadd.f32 %v299, %v300
    %v302 = vrcp.pop 8.0
    %v303 = vmul.f32 %v301, %v302
    %v304 = vsub.f32 %v291, %v303
    %v305 = vmul.f32 %v304, %v304
    %v306 = vrot.slane %v305, 4
    %v307 = vadd.f32 %v305, %v306
    %v308 = vrot.slane %v307, 2
    %v309 = vadd.f32 %v307, %v308
    %v310 = vrot.slane %v309, 1
    %v311 = vadd.f32 %v309, %v310
    %v312 = vmul.f32 %v311, %v302
    %v313 = vadd.f32 %v312, 0.001
    %v314 = vrsqrt.pop %v313
    %v315 = vmul.f32 %v304, %v314
    %v316 = vmax.f32 %v315, 0.0
    %v317 = vpack.c.bf16 %v316, %v316
    %v318 = vld [vmem:[%s5] sm:$0xf]
    %v319 = vld [vmem:[%s5 + $0x4] sm:$0xf]
    %v320 = vld [vmem:[%s5 + $0x8] sm:$0xf]
    %v321 = vld [vmem:[%s5 + $0xc] sm:$0xf]
    %v322 = vld [vmem:[%s5 + $0x10] sm:$0xf]
    %v323 = vld [vmem:[%s5 + $0x14] sm:$0xf]
    %v324 = vld [vmem:[%s5 + $0x18] sm:$0xf]
    %v325 = vld [vmem:[%s5 + $0x1c] sm:$0xf]
    %v326 = vld [vmem:[%s5 + $0x20] sm:$0xf]
    %v327 = vld [vmem:[%s5 + $0x24] sm:$0xf]
    %v328 = vld [vmem:[%s5 + $0x28] sm:$0xf]
    %v329 = vld [vmem:[%s5 + $0x2c] sm:$0xf]
    %v330 = vld [vmem:[%s5 + $0x30] sm:$0xf]
    %v331 = vld [vmem:[%s5 + $0x34] sm:$0xf]
    %v332 = vld [vmem:[%s5 + $0x38] sm:$0xf]
    %v333 = vld [vmem:[%s5 + $0x3c] sm:$0xf]
    %v334 = vld [vmem:[#allocation6] sm:$0x1]
    %v336 = vlaneseq
    %v337 = vshrl.u32 %v336, 7
    %v338 = vsub.s32 0, %v337
    %v339 = vrot.slane %v334, %v338
    %v357 = vunpack.c.l.b16 %v318
    %v358 = vunpack.c.l.b16 %v319
    %v359 = vunpack.c.l.b16 %v320
    %v360 = vunpack.c.l.b16 %v321
    %v361 = vunpack.c.l.b16 %v322
    %v362 = vunpack.c.l.b16 %v323
    %v363 = vunpack.c.l.b16 %v324
    %v364 = vunpack.c.l.b16 %v325
    %v365 = vunpack.c.l.b16 %v326
    %v366 = vunpack.c.l.b16 %v327
    %v367 = vunpack.c.l.b16 %v328
    %v368 = vunpack.c.l.b16 %v329
    %v369 = vunpack.c.l.b16 %v330
    %v370 = vunpack.c.l.b16 %v331
    %v371 = vunpack.c.l.b16 %v332
    %v372 = vunpack.c.l.b16 %v333
    %v373 = vpack.c.b16 %v358, %v357
    %v374 = vpack.c.b16 %v360, %v359
    %v375 = vpack.c.b16 %v362, %v361
    %v376 = vpack.c.b16 %v364, %v363
    %v377 = vpack.c.b16 %v366, %v365
    %v378 = vpack.c.b16 %v368, %v367
    %v379 = vpack.c.b16 %v370, %v369
    %v380 = vpack.c.b16 %v372, %v371
    %389 = vmatprep.subr.bf16.mxu0 0
    %390 = vmatpush1.bf16.msra.mxu0 %v373
    %391 = vmatprep.subr.bf16.mxu0 0
    %392 = vmatpush1.bf16.msra.mxu0 %v374
    %393 = vmatprep.subr.bf16.mxu0 0
    %394 = vmatpush1.bf16.msra.mxu0 %v375
    %395 = vmatprep.subr.bf16.mxu0 0
    %396 = vmatpush1.bf16.msra.mxu0 %v376
    %397 = vmatprep.subr.bf16.mxu0 0
    %398 = vmatpush1.bf16.msra.mxu0 %v377
    %399 = vmatprep.subr.bf16.mxu0 0
    %400 = vmatpush1.bf16.msra.mxu0 %v378
    %401 = vmatprep.subr.bf16.mxu0 0
    %402 = vmatpush1.bf16.msra.mxu0 %v379
    %403 = vmatprep.subr.bf16.mxu0 0
    %404 = vmatpush1.bf16.msra.mxu0 %v380
    %405 = vmatprep.subr.bf16.mxu0 0
    %406 = vmatpush1.bf16.msra.mxu0 0
    %407 = vmatprep.subr.bf16.mxu0 0
    %408 = vmatpush1.bf16.msra.mxu0 0
    %409 = vmatprep.subr.bf16.mxu0 0
    %410 = vmatpush1.bf16.msra.mxu0 0
    %411 = vmatprep.subr.bf16.mxu0 0
    %412 = vmatpush1.bf16.msra.mxu0 0
    %413 = vmatprep.subr.bf16.mxu0 0
    %414 = vmatpush1.bf16.msra.mxu0 0
    %415 = vmatprep.subr.bf16.mxu0 0
    %416 = vmatpush1.bf16.msra.mxu0 0
    %417 = vmatprep.subr.bf16.mxu0 0
    %418 = vmatpush1.bf16.msra.mxu0 0
    %419 = vmatprep.subr.bf16.mxu0 0
    %420 = vmatpush1.bf16.msra.mxu0 0
    %421 = vmatprep.mubr.bf16.mxu0 0
    %422 = vmatmul.mubr.bf16.gmra.mrb[0].mxu0 %v317
    %v423 = vpop.f32.mrb[0].mxu0
    %v424 = vadd.f32 %v339, %v423
    %v425 = vpop.f32.mrb[0].mxu0
    %v426 = vpop.f32.mrb[0].mxu0
    %v427 = vpop.f32.mrb[0].mxu0
    %428 = vdwg.mxu0
    %v429 = vmul.f32 %v424, 1.442695
    %v430 = vpow.pop %v429
    %v431 = vadd.f32 %v430, 0.0001
    %v432 = vrsqrt.pop %v431
    %v433 = vmul.f32 %v431, %v432
    %vm434 = vcmp.eq.f32.partialorder %v431, inf
    %v435 = vsel %vm434, %v431, %v433
    %vm436 = vcmp.eq.f32.partialorder %v431, 0.0
    %v437 = vand.u32 %v431, 2147483648
    %v438 = vsel %vm436, %v437, %v435
    %440 = vrot.lane.b32.xlu0 %v118, 15
    %v441 = vpop.permute.xlu0 %440
    %v443 = vmul.f32 %v438, %v441
    %445 = vrot.lane.b32.xlu0 %v443, 110
    %v446 = vpop.permute.xlu0 %445
    %v448 = vadd.f32 %v424, %v446
    %449 = vrot.lane.b32.xlu0 %v118, 35
    %v450 = vpop.permute.xlu0 %449
    %v452 = vmul.f32 %v438, %v450
    %454 = vrot.lane.b32.xlu0 %v452, 127
    %v455 = vpop.permute.xlu0 %454
    %v457 = vadd.f32 %v424, %v455
    %v458 = vpack.c.bf16 %v448, %v448
    %v459 = vld [vmem:[%s7] sm:$0xf]
    %v460 = vld [vmem:[%s7 + $0x4] sm:$0xf]
    %v461 = vld [vmem:[%s7 + $0x8] sm:$0x1]
    %v462 = vld [vmem:[#allocation7] sm:$0x1]
    %v464 = vlaneseq
    %v465 = vshrl.u32 %v464, 7
    %v466 = vsub.s32 0, %v465
    %v467 = vrot.slane %v462, %v466
    %v472 = vunpack.c.l.b16 %v459
    %v473 = vunpack.c.l.b16 %v460
    %v474 = vunpack.c.l.b16 %v461
    %v475 = vpack.c.b16 %v473, %v472
    %v476 = vpack.c.b16 %v474, %v474
    %vm478 = vcmask 146432
    %v480 = vsel %vm478, %v458, 0
    %vm482 = vcmask 1040384
    %v484 = vsel %vm482, %v476, 0
    %486 = vmatprep.subr.bf16.mxu0 0
    %487 = vmatpush1.bf16.msra.mxu0 %v475
    %488 = vmatprep.subr.bf16.mxu0 0
    %489 = vmatpush1.bf16.msra.mxu0 %v484
    %490 = vmatprep.subr.bf16.mxu0 0
    %491 = vmatpush1.bf16.msra.mxu0 0
    %492 = vmatprep.subr.bf16.mxu0 0
    %493 = vmatpush1.bf16.msra.mxu0 0
    %494 = vmatprep.subr.bf16.mxu0 0
    %495 = vmatpush1.bf16.msra.mxu0 0
    %496 = vmatprep.subr.bf16.mxu0 0
    %497 = vmatpush1.bf16.msra.mxu0 0
    %498 = vmatprep.subr.bf16.mxu0 0
    %499 = vmatpush1.bf16.msra.mxu0 0
    %500 = vmatprep.subr.bf16.mxu0 0
    %501 = vmatpush1.bf16.msra.mxu0 0
    %502 = vmatprep.subr.bf16.mxu0 0
    %503 = vmatpush1.bf16.msra.mxu0 0
    %504 = vmatprep.subr.bf16.mxu0 0
    %505 = vmatpush1.bf16.msra.mxu0 0
    %506 = vmatprep.subr.bf16.mxu0 0
    %507 = vmatpush1.bf16.msra.mxu0 0
    %508 = vmatprep.subr.bf16.mxu0 0
    %509 = vmatpush1.bf16.msra.mxu0 0
    %510 = vmatprep.subr.bf16.mxu0 0
    %511 = vmatpush1.bf16.msra.mxu0 0
    %512 = vmatprep.subr.bf16.mxu0 0
    %513 = vmatpush1.bf16.msra.mxu0 0
    %514 = vmatprep.subr.bf16.mxu0 0
    %515 = vmatpush1.bf16.msra.mxu0 0
    %516 = vmatprep.subr.bf16.mxu0 0
    %517 = vmatpush1.bf16.msra.mxu0 0
    %518 = vmatprep.mubr.bf16.mxu0 0
    %519 = vmatmul.mubr.bf16.gmra.mrb[0].mxu0 %v480
    %v520 = vpop.f32.mrb[0].mxu0
    %v521 = vadd.f32 %v467, %v520
    %v522 = vpop.f32.mrb[0].mxu0
    %v523 = vpop.f32.mrb[0].mxu0
    %v524 = vpop.f32.mrb[0].mxu0
    %525 = vdwg.mxu0
    %vm526 = vcmask 523264
    %v527 = vsel %vm526, %v521, 0.0
    %v528 = vrot.slane %v527, 4
    %v529 = vadd.f32 %v527, %v528
    %v530 = vrot.slane %v529, 2
    %v531 = vadd.f32 %v529, %v530
    %v532 = vrot.slane %v531, 1
    %v533 = vadd.f32 %v531, %v532
    %v534 = vmul.f32 %v533, %v302
    %v535 = vsub.f32 %v521, %v534
    %v536 = vmul.f32 %v535, %v535
    %v537 = vsel %vm526, %v536, 0.0
    %v538 = vrot.slane %v537, 4
    %v539 = vadd.f32 %v537, %v538
    %v540 = vrot.slane %v539, 2
    %v541 = vadd.f32 %v539, %v540
    %v542 = vrot.slane %v541, 1
    %v543 = vadd.f32 %v541, %v542
    %v544 = vmul.f32 %v543, %v302
    %v545 = vadd.f32 %v544, 0.001
    %v546 = vrsqrt.pop %v545
    %v547 = vmul.f32 %v535, %v546
    %v548 = vmax.f32 %v547, 0.0
    %v549 = vpack.c.bf16 %v548, %v548
    %v550 = vld [vmem:[#allocation9] sm:$0xff]
    %v551 = vld [vmem:[#allocation9 + $0x8] sm:$0xff]
    %v552 = vld [vmem:[#allocation9 + $0x10] sm:$0xff]
    %v553 = vld [vmem:[#allocation9 + $0x18] sm:$0xff]
    %v554 = vld [vmem:[#allocation9 + $0x20] sm:$0xff]
    %v555 = vld [vmem:[#allocation9 + $0x28] sm:$0xff]
    %v556 = vld [vmem:[#allocation9 + $0x30] sm:$0xff]
    %v557 = vld [vmem:[#allocation9 + $0x38] sm:$0xff]
    %v558 = vld [vmem:[#allocation9 + $0x40] sm:$0xff]
    %v559 = vld [vmem:[#allocation9 + $0x48] sm:$0xff]
    %v560 = vld [vmem:[#allocation9 + $0x50] sm:$0xff]
    %v561 = vld [vmem:[#allocation9 + $0x58] sm:$0xff]
    %v562 = vld [vmem:[#allocation9 + $0x60] sm:$0xff]
    %v563 = vld [vmem:[#allocation9 + $0x68] sm:$0xff]
    %v564 = vld [vmem:[#allocation9 + $0x70] sm:$0xff]
    %v565 = vld [vmem:[#allocation9 + $0x78] sm:$0xff]
    %v566 = vld [vmem:[#allocation10] sm:$0xf]
    %v568 = vlaneseq
    %v569 = vshrl.u32 %v568, 7
    %v570 = vsub.s32 0, %v569
    %v571 = vrot.slane %v566, %v570
    %v572 = vlaneseq
    %v573 = vshrl.u32 %v572, 7
    %v574 = vsub.s32 1, %v573
    %v575 = vrot.slane %v566, %v574
    %v576 = vlaneseq
    %v577 = vshrl.u32 %v576, 7
    %v578 = vsub.s32 2, %v577
    %v579 = vrot.slane %v566, %v578
    %v580 = vlaneseq
    %v581 = vshrl.u32 %v580, 7
    %v582 = vsub.s32 3, %v581
    %v583 = vrot.slane %v566, %v582
    %v604 = vunpack.c.l.b16 %v550
    %v605 = vunpack.c.h.b16 %v550
    %v606 = vunpack.c.l.b16 %v551
    %v607 = vunpack.c.h.b16 %v551
    %v608 = vunpack.c.l.b16 %v552
    %v609 = vunpack.c.h.b16 %v552
    %v610 = vunpack.c.l.b16 %v553
    %v611 = vunpack.c.h.b16 %v553
    %v612 = vunpack.c.l.b16 %v554
    %v613 = vunpack.c.h.b16 %v554
    %v614 = vunpack.c.l.b16 %v555
    %v615 = vunpack.c.h.b16 %v555
    %v616 = vunpack.c.l.b16 %v556
    %v617 = vunpack.c.h.b16 %v556
    %v618 = vunpack.c.l.b16 %v557
    %v619 = vunpack.c.h.b16 %v557
    %v620 = vunpack.c.l.b16 %v558
    %v621 = vunpack.c.h.b16 %v558
    %v622 = vunpack.c.l.b16 %v559
    %v623 = vunpack.c.h.b16 %v559
    %v624 = vunpack.c.l.b16 %v560
    %v625 = vunpack.c.h.b16 %v560
    %v626 = vunpack.c.l.b16 %v561
    %v627 = vunpack.c.h.b16 %v561
    %v628 = vunpack.c.l.b16 %v562
    %v629 = vunpack.c.h.b16 %v562
    %v630 = vunpack.c.l.b16 %v563
    %v631 = vunpack.c.h.b16 %v563
    %v632 = vunpack.c.l.b16 %v564
    %v633 = vunpack.c.h.b16 %v564
    %v634 = vunpack.c.l.b16 %v565
    %v635 = vunpack.c.h.b16 %v565
    %v636 = vpack.c.b16 %v608, %v604
    %v637 = vpack.c.b16 %v609, %v605
    %v638 = vpack.c.b16 %v610, %v606
    %v639 = vpack.c.b16 %v611, %v607
    %v640 = vpack.c.b16 %v616, %v612
    %v641 = vpack.c.b16 %v617, %v613
    %v642 = vpack.c.b16 %v618, %v614
    %v643 = vpack.c.b16 %v619, %v615
    %v644 = vpack.c.b16 %v624, %v620
    %v645 = vpack.c.b16 %v625, %v621
    %v646 = vpack.c.b16 %v626, %v622
    %v647 = vpack.c.b16 %v627, %v623
    %v648 = vpack.c.b16 %v632, %v628
    %v649 = vpack.c.b16 %v633, %v629
    %v650 = vpack.c.b16 %v634, %v630
    %v651 = vpack.c.b16 %v635, %v631
    %v669 = vsel %vm526, %v549, 0
    %671 = vmatprep.subr.bf16.mxu0 %v637
    %672 = vmatpush1.bf16.msra.mxu0 %v636
    %673 = vmatprep.subr.bf16.mxu0 %v641
    %674 = vmatpush1.bf16.msra.mxu0 %v640
    %675 = vmatprep.subr.bf16.mxu0 %v645
    %676 = vmatpush1.bf16.msra.mxu0 %v644
    %677 = vmatprep.subr.bf16.mxu0 %v649
    %678 = vmatpush1.bf16.msra.mxu0 %v648
    %679 = vmatprep.subr.bf16.mxu0 0
    %680 = vmatpush1.bf16.msra.mxu0 0
    %681 = vmatprep.subr.bf16.mxu0 0
    %682 = vmatpush1.bf16.msra.mxu0 0
    %683 = vmatprep.subr.bf16.mxu0 0
    %684 = vmatpush1.bf16.msra.mxu0 0
    %685 = vmatprep.subr.bf16.mxu0 0
    %686 = vmatpush1.bf16.msra.mxu0 0
    %687 = vmatprep.subr.bf16.mxu0 0
    %688 = vmatpush1.bf16.msra.mxu0 0
    %689 = vmatprep.subr.bf16.mxu0 0
    %690 = vmatpush1.bf16.msra.mxu0 0
    %691 = vmatprep.subr.bf16.mxu0 0
    %692 = vmatpush1.bf16.msra.mxu0 0
    %693 = vmatprep.subr.bf16.mxu0 0
    %694 = vmatpush1.bf16.msra.mxu0 0
    %695 = vmatprep.subr.bf16.mxu0 0
    %696 = vmatpush1.bf16.msra.mxu0 0
    %697 = vmatprep.subr.bf16.mxu0 0
    %698 = vmatpush1.bf16.msra.mxu0 0
    %699 = vmatprep.subr.bf16.mxu0 0
    %700 = vmatpush1.bf16.msra.mxu0 0
    %701 = vmatprep.subr.bf16.mxu0 0
    %702 = vmatpush1.bf16.msra.mxu0 0
    %703 = vmatprep.mubr.bf16.mxu0 0
    %704 = vmatmul.mubr.bf16.gmra.mrb[0].mxu0 %v669
    %v705 = vpop.f32.mrb[0].mxu0
    %v706 = vadd.f32 %v571, %v705
    %v707 = vpop.f32.mrb[0].mxu0
    %v708 = vadd.f32 %v575, %v707
    %v709 = vpop.f32.mrb[0].mxu0
    %v710 = vpop.f32.mrb[0].mxu0
    %711 = vdwg.mxu0
    %712 = vmatprep.subr.bf16.mxu0 %v639
    %713 = vmatpush1.bf16.msra.mxu0 %v638
    %714 = vmatprep.subr.bf16.mxu0 %v643
    %715 = vmatpush1.bf16.msra.mxu0 %v642
    %716 = vmatprep.subr.bf16.mxu0 %v647
    %717 = vmatpush1.bf16.msra.mxu0 %v646
    %718 = vmatprep.subr.bf16.mxu0 %v651
    %719 = vmatpush1.bf16.msra.mxu0 %v650
    %720 = vmatprep.subr.bf16.mxu0 0
    %721 = vmatpush1.bf16.msra.mxu0 0
    %722 = vmatprep.subr.bf16.mxu0 0
    %723 = vmatpush1.bf16.msra.mxu0 0
    %724 = vmatprep.subr.bf16.mxu0 0
    %725 = vmatpush1.bf16.msra.mxu0 0
    %726 = vmatprep.subr.bf16.mxu0 0
    %727 = vmatpush1.bf16.msra.mxu0 0
    %728 = vmatprep.subr.bf16.mxu0 0
    %729 = vmatpush1.bf16.msra.mxu0 0
    %730 = vmatprep.subr.bf16.mxu0 0
    %731 = vmatpush1.bf16.msra.mxu0 0
    %732 = vmatprep.subr.bf16.mxu0 0
    %733 = vmatpush1.bf16.msra.mxu0 0
    %734 = vmatprep.subr.bf16.mxu0 0
    %735 = vmatpush1.bf16.msra.mxu0 0
    %736 = vmatprep.subr.bf16.mxu0 0
    %737 = vmatpush1.bf16.msra.mxu0 0
    %738 = vmatprep.subr.bf16.mxu0 0
    %739 = vmatpush1.bf16.msra.mxu0 0
    %740 = vmatprep.subr.bf16.mxu0 0
    %741 = vmatpush1.bf16.msra.mxu0 0
    %742 = vmatprep.subr.bf16.mxu0 0
    %743 = vmatpush1.bf16.msra.mxu0 0
    %744 = vmatprep.mubr.bf16.mxu0 0
    %745 = vmatmul.mubr.bf16.gmra.mrb[0].mxu0 %v669
    %v746 = vpop.f32.mrb[0].mxu0
    %v747 = vadd.f32 %v579, %v746
    %v748 = vpop.f32.mrb[0].mxu0
    %v749 = vadd.f32 %v583, %v748
    %v750 = vpop.f32.mrb[0].mxu0
    %v751 = vpop.f32.mrb[0].mxu0
    %752 = vdwg.mxu0
    %v753 = vmax.f32 %v706, %v708
    %754 = vmax.xlane.f32.xlu0 %v753
    %v755 = vpop.xlane.xlu0 %754
    %v756 = vsub.f32 %v706, %v755
    %v757 = vsub.f32 %v708, %v755
    %v758 = vmul.f32 %v756, 1.442695
    %v759 = vpow.pop %v758
    %v760 = vmul.f32 %v757, 1.442695
    %v761 = vpow.pop %v760
    %v762 = vadd.f32 %v759, %v761
    %763 = vadd.xlane.f32.xlu0 %v762
    %v764 = vpop.xlane.xlu0 %763
    %v765 = vrcp.pop %v764
    %v766 = vmul.f32 %v759, %v765
    %v767 = vmul.f32 %v761, %v765
    %v768 = vmul.f32 %v457, 1.442695
    %v769 = vpow.pop %v768
    %771 = vset.pattern.permute.xlu0 36
    %772 = vperm.xlu0 %771, %v769
    %v773 = vpop.permute.xlu0 %772
    %v775 = vmul.f32 %v773, %v766
    %v776 = vmul.f32 %v773, %v767
    %v777 = vld [vmem:[%s11] sm:$0x3]
    %v778 = vmul.f32 %v777, 1.442695
    %v779 = vpow.pop %v778
    %v780 = vadd.f32 %v779, 1.0
    %v781 = vsub.f32 %v780, 1.0
    %v782 = vadd.f32 %v781, 1.0
    %v783 = vrcp.pop %v782
    %v784 = vmul.f32 %v783, 676.5204
    %v785 = vadd.f32 %v784, 1.0
    %v786 = vadd.f32 %v781, 2.0
    %v787 = vrcp.pop %v786
    %v788 = vmul.f32 %v787, -1259.1392
    %v789 = vadd.f32 %v785, %v788
    %v790 = vadd.f32 %v781, 3.0
    %v791 = vrcp.pop %v790
    %v792 = vmul.f32 %v791, 771.3234
    %v793 = vadd.f32 %v789, %v792
    %v794 = vadd.f32 %v781, 4.0
    %v795 = vrcp.pop %v794
    %v796 = vmul.f32 %v795, -176.61504
    %v797 = vadd.f32 %v793, %v796
    %v798 = vadd.f32 %v781, 5.0
    %v799 = vrcp.pop %v798
    %v800 = vmul.f32 %v799, 12.507343
    %v801 = vadd.f32 %v797, %v800
    %v802 = vadd.f32 %v781, 6.0
    %v803 = vrcp.pop %v802
    %v804 = vmul.f32 %v803, -0.1385711
    %v805 = vadd.f32 %v801, %v804
    %v806 = vadd.f32 %v781, 7.0
    %v807 = vrcp.pop %v806
    %v808 = vmul.f32 %v807, 9.984369e-06
    %v809 = vadd.f32 %v805, %v808
    %v810 = vadd.f32 %v781, 8.0
    %v811 = vrcp.pop %v810
    %v812 = vmul.f32 %v811, 1.5056327e-07
    %v813 = vadd.f32 %v809, %v812
    %v814 = vadd.f32 %v806, 0.5
    %v815 = vadd.f32 %v781, 0.5
    %v816 = vlog2.pop %v814
    %v817 = vmul.f32 %v816, 0.6931472
    %v818 = vmul.f32 %v815, %v817
    %v819 = vadd.f32 %v818, 0.9189385
    %v820 = vsub.f32 %v819, %v814
    %v821 = vlog2.pop %v813
    %v822 = vmul.f32 %v821, 0.6931472
    %v823 = vadd.f32 %v820, %v822
    %v824 = vsub.f32 %v823, %v777
    %v825 = vsub.f32 0.0, %v747
    %v826 = vsub.f32 0.0, %v749
    %v827 = vmax.f32 %v825, 0.0
    %v828 = vmax.f32 %v826, 0.0
    %v829 = vand.u32 2147483647, %v825
    %v830 = vand.u32 2147483647, %v826
    %v831 = vsub.f32 0.0, %v829
    %v832 = vsub.f32 0.0, %v830
    %v833 = vmul.f32 %v831, 1.442695
    %v834 = vpow.pop %v833
    %v835 = vmul.f32 %v832, 1.442695
    %v836 = vpow.pop %v835
    %v837 = vadd.f32 %v834, 1.0
    %v838 = vadd.f32 %v836, 1.0
    %v839 = vlog2.pop %v837
    %v840 = vmul.f32 %v839, 0.6931472
    %v841 = vlog2.pop %v838
    %v842 = vmul.f32 %v841, 0.6931472
    %v843 = vadd.f32 %v827, %v840
    %v844 = vadd.f32 %v828, %v842
    %v845 = vadd.f32 %v779, 1e-08
    %v846 = vlog2.pop %v845
    %v847 = vmul.f32 %v846, 0.6931472
    %v849 = vlaneseq
    %v850 = vshrl.u32 %v849, 7
    %v851 = vsub.s32 0, %v850
    %v852 = vrot.slane %v779, %v851
    %v853 = vlaneseq
    %v854 = vshrl.u32 %v853, 7
    %v855 = vsub.s32 1, %v854
    %v856 = vrot.slane %v779, %v855
    %v859 = vadd.f32 %v852, %v775
    %v860 = vadd.f32 %v856, %v776
    %v861 = vadd.f32 %v859, 1e-08
    %v862 = vadd.f32 %v860, 1e-08
    %v863 = vlog2.pop %v861
    %v864 = vmul.f32 %v863, 0.6931472
    %v865 = vlog2.pop %v862
    %v866 = vmul.f32 %v865, 0.6931472
    %v868 = vlaneseq
    %v869 = vshrl.u32 %v868, 7
    %v870 = vsub.s32 0, %v869
    %v871 = vrot.slane %v847, %v870
    %v872 = vlaneseq
    %v873 = vshrl.u32 %v872, 7
    %v874 = vsub.s32 1, %v873
    %v875 = vrot.slane %v847, %v874
    %v878 = vsub.f32 %v871, %v864
    %v879 = vsub.f32 %v875, %v866
    %v880 = vmul.f32 %v852, %v878
    %v881 = vmul.f32 %v856, %v879
    %v882 = vadd.f32 %v825, %v880
    %v883 = vadd.f32 %v826, %v881
    %v884 = vmax.f32 %v882, 0.0
    %v885 = vmax.f32 %v883, 0.0
    %v886 = vand.u32 2147483647, %v882
    %v887 = vand.u32 2147483647, %v883
    %v888 = vsub.f32 0.0, %v886
    %v889 = vsub.f32 0.0, %v887
    %v890 = vmul.f32 %v888, 1.442695
    %v891 = vpow.pop %v890
    %v892 = vmul.f32 %v889, 1.442695
    %v893 = vpow.pop %v892
    %v894 = vadd.f32 %v891, 1.0
    %v895 = vadd.f32 %v893, 1.0
    %v896 = vlog2.pop %v894
    %v897 = vmul.f32 %v896, 0.6931472
    %v898 = vlog2.pop %v895
    %v899 = vmul.f32 %v898, 0.6931472
    %v900 = vadd.f32 %v884, %v897
    %v901 = vadd.f32 %v885, %v899
    %v902 = vsub.f32 %v900, %v843
    %v903 = vsub.f32 %v901, %v844
    %v904 = vsub.f32 0.0, %v843
    %v905 = vsub.f32 0.0, %v844
    %v906 = vadd.f32 %v904, %v882
    %v907 = vadd.f32 %v905, %v883
    %v908 = vadd.f32 %v775, 1e-08
    %v909 = vadd.f32 %v776, 1e-08
    %v910 = vlog2.pop %v908
    %v911 = vmul.f32 %v910, 0.6931472
    %v912 = vlog2.pop %v909
    %v913 = vmul.f32 %v912, 0.6931472
    %v914 = vsub.f32 %v911, %v864
    %v915 = vsub.f32 %v913, %v866
    %v916 = vmul.f32 %v116, %v914
    %v917 = vmul.f32 %v117, %v915
    %v918 = vadd.f32 %v906, %v916
    %v919 = vadd.f32 %v907, %v917
    %v920 = vadd.f32 %v116, %v852
    %v921 = vadd.f32 %v117, %v856
    %v922 = vsub.f32 %v920, 1.0
    %v923 = vsub.f32 %v921, 1.0
    %v924 = vadd.f32 %v922, 1.0
    %v925 = vadd.f32 %v923, 1.0
    %v926 = vrcp.pop %v924
    %v927 = vrcp.pop %v925
    %v928 = vmul.f32 %v926, 676.5204
    %v929 = vmul.f32 %v927, 676.5204
    %v930 = vadd.f32 %v928, 1.0
    %v931 = vadd.f32 %v929, 1.0
    %v932 = vadd.f32 %v922, 2.0
    %v933 = vadd.f32 %v923, 2.0
    %v934 = vrcp.pop %v932
    %v935 = vrcp.pop %v933
    %v936 = vmul.f32 %v934, -1259.1392
    %v937 = vmul.f32 %v935, -1259.1392
    %v938 = vadd.f32 %v930, %v936
    %v939 = vadd.f32 %v931, %v937
    %v940 = vadd.f32 %v922, 3.0
    %v941 = vadd.f32 %v923, 3.0
    %v942 = vrcp.pop %v940
    %v943 = vrcp.pop %v941
    %v944 = vmul.f32 %v942, 771.3234
    %v945 = vmul.f32 %v943, 771.3234
    %v946 = vadd.f32 %v938, %v944
    %v947 = vadd.f32 %v939, %v945
    %v948 = vadd.f32 %v922, 4.0
    %v949 = vadd.f32 %v923, 4.0
    %v950 = vrcp.pop %v948
    %v951 = vrcp.pop %v949
    %v952 = vmul.f32 %v950, -176.61504
    %v953 = vmul.f32 %v951, -176.61504
    %v954 = vadd.f32 %v946, %v952
    %v955 = vadd.f32 %v947, %v953
    %v956 = vadd.f32 %v922, 5.0
    %v957 = vadd.f32 %v923, 5.0
    %v958 = vrcp.pop %v956
    %v959 = vrcp.pop %v957
    %v960 = vmul.f32 %v958, 12.507343
    %v961 = vmul.f32 %v959, 12.507343
    %v962 = vadd.f32 %v954, %v960
    %v963 = vadd.f32 %v955, %v961
    %v964 = vadd.f32 %v922, 6.0
    %v965 = vadd.f32 %v923, 6.0
    %v966 = vrcp.pop %v964
    %v967 = vrcp.pop %v965
    %v968 = vmul.f32 %v966, -0.1385711
    %v969 = vmul.f32 %v967, -0.1385711
    %v970 = vadd.f32 %v962, %v968
    %v971 = vadd.f32 %v963, %v969
    %v972 = vadd.f32 %v922, 7.0
    %v973 = vadd.f32 %v923, 7.0
    %v974 = vrcp.pop %v972
    %v975 = vrcp.pop %v973
    %v976 = vmul.f32 %v974, 9.984369e-06
    %v977 = vmul.f32 %v975, 9.984369e-06
    %v978 = vadd.f32 %v970, %v976
    %v979 = vadd.f32 %v971, %v977
    %v980 = vadd.f32 %v922, 8.0
    %v981 = vadd.f32 %v923, 8.0
    %v982 = vrcp.pop %v980
    %v983 = vrcp.pop %v981
    %v984 = vmul.f32 %v982, 1.5056327e-07
    %v985 = vmul.f32 %v983, 1.5056327e-07
    %v986 = vadd.f32 %v978, %v984
    %v987 = vadd.f32 %v979, %v985
    %v988 = vadd.f32 %v972, 0.5
    %v989 = vadd.f32 %v973, 0.5
    %v990 = vadd.f32 %v922, 0.5
    %v991 = vadd.f32 %v923, 0.5
    %v992 = vlog2.pop %v988
    %v993 = vmul.f32 %v992, 0.6931472
    %v994 = vlog2.pop %v989
    %v995 = vmul.f32 %v994, 0.6931472
    %v996 = vmul.f32 %v990, %v993
    %v997 = vmul.f32 %v991, %v995
    %v998 = vadd.f32 %v996, 0.9189385
    %v999 = vadd.f32 %v997, 0.9189385
    %v1000 = vsub.f32 %v998, %v988
    %v1001 = vsub.f32 %v999, %v989
    %v1002 = vlog2.pop %v986
    %v1003 = vmul.f32 %v1002, 0.6931472
    %v1004 = vlog2.pop %v987
    %v1005 = vmul.f32 %v1004, 0.6931472
    %v1006 = vadd.f32 %v1000, %v1003
    %v1007 = vadd.f32 %v1001, %v1005
    %v1008 = vadd.f32 %v918, %v1006
    %v1009 = vadd.f32 %v919, %v1007
    %v1011 = vlaneseq
    %v1012 = vshrl.u32 %v1011, 7
    %v1013 = vsub.s32 0, %v1012
    %v1014 = vrot.slane %v824, %v1013
    %v1015 = vlaneseq
    %v1016 = vshrl.u32 %v1015, 7
    %v1017 = vsub.s32 1, %v1016
    %v1018 = vrot.slane %v824, %v1017
    %v1021 = vsub.f32 %v1008, %v1014
    %v1022 = vsub.f32 %v1009, %v1018
    %v1023 = vld [vmem:[%s1] sm:$0xff]
    %v1024 = vld [vmem:[%s1 + $0x8] sm:$0xff]
    %v1025 = vsub.f32 %v1021, %v1023
    %v1026 = vsub.f32 %v1022, %v1024
    %vm1027 = vcmp.lt.f32.partialorder %v116, 1e-08
    %vm1028 = vcmp.lt.f32.partialorder %v117, 1e-08
    %v1029 = vsel %vm1027, %v902, 0.0
    %v1030 = vsel %vm1028, %v903, 0.0
    %vm1031 = vcmp.gt.f32.partialorder %v116, 1e-08
    %vm1032 = vcmp.gt.f32.partialorder %v117, 1e-08
    %v1033 = vsel %vm1031, %v1025, 0.0
    %v1034 = vsel %vm1032, %v1026, 0.0
    %v1035 = vadd.f32 %v1029, %v1033
    %v1036 = vadd.f32 %v1030, %v1034
    %v1037 = vadd.f32 %v1035, %v1036
    %1038 = vadd.xlane.f32.xlu0 %v1037
    %v1039 = vpop.xlane.xlu0 %1038
    %v1040 = vsub.f32 0.0, %v1039
    %v1041 = vmul.f32 %v424, %v424
    %1043 = vrot.lane.b32.xlu0 %v1041, 18
    %v1044 = vpop.permute.xlu0 %1043
    %v1046 = vadd.f32 %v431, %v1044
    %v1047 = vsub.f32 %v1046, 1.0
    %v1048 = vlog2.pop %v431
    %v1049 = vmul.f32 %v1048, 0.6931472
    %v1050 = vsub.f32 %v1047, %v1049
    %v1051 = vmul.f32 %v1050, 0.5
    %1053 = vrot.lane.b32.xlu0 %v1051, 110
    %v1054 = vpop.permute.xlu0 %1053
    %v1056 = vsel %vm478, %v1054, 0.0
    %1057 = vadd.xlane.f32.xlu0 %v1056
    %v1058 = vpop.xlane.xlu0 %1057
    %1059 = vrot.lane.b32.xlu0 %v118, 36
    %v1060 = vpop.permute.xlu0 %1059
    %v1062 = vrcp.pop %v1060
    %v1063 = vmul.f32 %v431, %v1062
    %v1064 = vsub.f32 %v424, %v1060
    %v1065 = vmul.f32 %v1064, %v1064
    %v1066 = vrcp.pop %v450
    %v1067 = vmul.f32 %v1065, %v1066
    %1069 = vrot.lane.b32.xlu0 %v1067, 1
    %v1070 = vpop.permute.xlu0 %1069
    %v1072 = vadd.f32 %v1063, %v1070
    %v1073 = vsub.f32 %v1072, 1.0
    %v1074 = vlog2.pop %v1063
    %v1075 = vmul.f32 %v1074, 0.6931472
    %v1076 = vsub.f32 %v1073, %v1075
    %v1077 = vmul.f32 %v1076, 0.5
    %v1078 = vadd.f32 %v1077, 0.0
    %v1079 = vadd.f32 %v1078, %v1058
    %v1080 = vlaneseq
    %v1081 = vand.u32 %v1080, 127
    %vm1082 = vcmp.eq.s32.totalorder %v1081, 0
    %v1083 = vsel %vm1082, %v1040, 0.0
    %vm1084 = vcmp.eq.s32.totalorder %v1081, 1
    %1086 = vset.pattern.permute.xlu0 37
    %1087 = vperm.xlu0 %1086, %v1079
    %v1088 = vpop.permute.xlu0 %1087
    %v1090 = vsel %vm1084, %v1088, 0.0
    %v1091 = vadd.f32 %v1083, %v1090
    %1092 = vst [vmem:[%s12] sm:$0xff] %v1091
    // Predicated region
    $region74: #{gaatac_forward.1} parent=1 // pred_check
      _
    $region75: #{gaatac_forward.1} parent=1 // pred_check_branch
      %1094 = sbr.rel (0) target = $region77
    $region76: #{gaatac_forward.1} parent=1 // pred_region
      _
    $region77: #{gaatac_forward.1} parent=1 // pred_fallthru
      _
    // Predicated region
    $region78: #{gaatac_forward.1} parent=1 // pred_check
      _
    $region79: #{gaatac_forward.1} parent=1 // pred_check_branch
      %1096 = sbr.rel (0) target = $region81
    $region80: #{gaatac_forward.1} parent=1 // pred_region
      _
    $region81: #{gaatac_forward.1} parent=1 // pred_fallthru
      _
    %1097 = vsyncpa [#allocation3], 1
    %1098 = vsyncpa [#allocation5], 1
    %1099 = vsyncpa [#allocation8], 1
    %1100 = vsyncpa [#allocation11], 1

</llo_original>
